<compile_context>
chip_gen: v7x
topology: tpu7x:2x2x1
jax: 0.10.0
libtpu: 0.0.40
codegen_flags: <defaults>
</compile_context>

<pallas_src>
import functools

import jax
import jax.numpy as jnp
from jax.experimental import pallas as pl
from jax.experimental.pallas import tpu as pltpu

NUM_CLASSES = 10
NUM_PREDICTIONS = 5

VMEM_LIMIT = 32 * 1024 * 1024          # explicit scoped-VMEM budget (all gens)
MAX_TAP_ROWS = 2048                    # conv tile: rows of the tap matrix


# ---------------------------------------------------------------------------
# Kernel 1: fused 3x3 conv (single fused-K matmul) + bias + ReLU + 2x2 maxpool
# grid = (N, Ho // th); each step produces `th` pooled output rows.
# ---------------------------------------------------------------------------
def conv_pool_kernel(taps_ref, w_ref, b_ref, o_ref):
    # taps_ref: (1, 2*th*W, 9*Cin)   rows ordered (h_local, w%2, w//2)
    # w_ref:    (9*Cin, Cout)        b_ref: (1, Cout)
    # o_ref:    (1, th, Wo, Cout)
    th, wo, cout = o_ref.shape[1], o_ref.shape[2], o_ref.shape[3]

    y = jnp.dot(taps_ref[0], w_ref[...], preferred_element_type=jnp.float32)
    y = jnp.maximum(y + b_ref[...], 0.0)                      # bias + ReLU

    # 2x2 max pool, stride 2 — thanks to the (h, w%2, w//2) row order both
    # pooled pairs live on major dims: pure integer indexing, no scratch.
    y = y.reshape(2 * th, 2, wo, cout)
    y = jnp.maximum(y[:, 0], y[:, 1])                         # pool along W
    y = y.reshape(th, 2, wo, cout)
    o_ref[0] = jnp.maximum(y[:, 0], y[:, 1])                  # pool along H


def _im2col_fused(x_nhwc):
    """(N, H*W, 9*Cin) tap matrix; rows ordered (h, w%2, w//2) per image."""
    n, h, w, c = x_nhwc.shape
    xp = jnp.pad(x_nhwc, ((0, 0), (1, 1), (1, 1), (0, 0)))
    taps = jnp.stack(
        [xp[:, dy:dy + h, dx:dx + w, :] for dy in range(3) for dx in range(3)],
        axis=3)                                               # (N, H, W, 9, C)
    taps = taps.reshape(n, h, w, 9 * c)
    # reorder W -> (w%2, w//2) so the kernel's pool needs no strided gathers
    taps = jnp.concatenate([taps[:, :, 0::2, :], taps[:, :, 1::2, :]], axis=2)
    return taps.reshape(n, h * w, 9 * c)


def conv3x3_relu_pool(x_nhwc, w_oihw, b):
    n, h, w, cin = x_nhwc.shape
    cout = w_oihw.shape[0]
    ho, wo = h // 2, w // 2

    taps = _im2col_fused(x_nhwc)                              # (N, H*W, 9*Cin)
    # (Cout, Cin, 3, 3) -> (kh, kw, Cin, Cout) -> (9*Cin, Cout); tiny copy.
    wk = jnp.transpose(w_oihw, (2, 3, 1, 0)).reshape(9 * cin, cout)

    # pooled-row tile: largest divisor of Ho keeping the tap tile bounded
    th = ho
    while 2 * th * w > MAX_TAP_ROWS and th % 2 == 0:
        th //= 2

    out = pl.pallas_call(
        conv_pool_kernel,
        out_shape=jax.ShapeDtypeStruct((n, ho, wo, cout), jnp.float32),
        grid_spec=pltpu.PrefetchScalarGridSpec(
            num_scalar_prefetch=0,
            grid=(n, ho // th),
            in_specs=[
                pl.BlockSpec((1, 2 * th * w, 9 * cin), lambda ni, i: (ni, i, 0)),
                pl.BlockSpec((9 * cin, cout), lambda ni, i: (0, 0)),
                pl.BlockSpec((1, cout), lambda ni, i: (0, 0)),
            ],
            out_specs=pl.BlockSpec((1, th, wo, cout), lambda ni, i: (ni, i, 0, 0)),
        ),
        compiler_params=pltpu.CompilerParams(
            dimension_semantics=("parallel", "parallel"),
            vmem_limit_bytes=VMEM_LIMIT),
    )(taps, wk, b.reshape(1, cout))
    return out                                                # (N, Ho, Wo, Cout)


# ---------------------------------------------------------------------------
# Kernel 2: tiled linear, y = x @ W^T + b (PyTorch (out,in) weight, no
# wrapper transpose).  grid = (out-tiles, K-tiles), K last; accumulate
# directly into the resident f32 output block; epilogue fuses bias +
# ReLU / partial sigmoid.
# ---------------------------------------------------------------------------
def linear_kernel(x_ref, w_ref, b_ref, o_ref, *, activation, sigmoid_cols):
    # Grid queries hoisted to the kernel top level (never inside pl.when
    # bodies — the staged cond jaxpr cannot carry program_id on all backends).
    j = pl.program_id(0)
    k = pl.program_id(1)
    nk = pl.num_programs(1)

    @pl.when(k == 0)
    def _():
        o_ref[...] = jnp.zeros_like(o_ref)

    # contract on the 'in' dim of the (out, in) weight  ==  x @ W^T
    o_ref[...] += jax.lax.dot_general(
        x_ref[...], w_ref[...],
        dimension_numbers=(((1,), (1,)), ((), ())),
        preferred_element_type=jnp.float32)

    @pl.when(k == nk - 1)
    def _():
        y = o_ref[...] + b_ref[...]
        if activation == "relu":
            y = jnp.maximum(y, 0.0)
        if sigmoid_cols:
            col = (jax.lax.broadcasted_iota(jnp.int32, y.shape, 1)
                   + j * y.shape[1])
            y = jnp.where(col < sigmoid_cols, jax.nn.sigmoid(y), y)
        o_ref[...] = y


def linear(x, w_out_in, b, *, activation=None, sigmoid_cols=0):
    nrows, in_f = x.shape
    out_f = w_out_in.shape[0]
    tn = 256 if out_f % 256 == 0 else out_f
    tk = 512 if in_f % 512 == 0 else in_f
    # TODO(synk): optionally stream fc/head weights in bf16 (f32 accumulate)
    # on v6e/v7x to halve the HBM weight traffic.
    return pl.pallas_call(
        functools.partial(linear_kernel, activation=activation,
                          sigmoid_cols=sigmoid_cols),
        out_shape=jax.ShapeDtypeStruct((nrows, out_f), jnp.float32),
        grid_spec=pltpu.PrefetchScalarGridSpec(
            num_scalar_prefetch=0,
            grid=(out_f // tn, in_f // tk),
            in_specs=[
                pl.BlockSpec((nrows, tk), lambda j, k: (0, k)),
                pl.BlockSpec((tn, tk), lambda j, k: (j, k)),
                pl.BlockSpec((1, tn), lambda j, k: (0, j)),
            ],
            out_specs=pl.BlockSpec((nrows, tn), lambda j, k: (0, j)),
        ),
        compiler_params=pltpu.CompilerParams(
            dimension_semantics=("parallel", "arbitrary"),
            vmem_limit_bytes=VMEM_LIMIT),
    )(x, w_out_in, b.reshape(1, out_f))


# ---------------------------------------------------------------------------
# Parameter construction (deterministic, PyTorch-default-style init)
# ---------------------------------------------------------------------------
def _uniform(key, shape, fan_in):
    bound = 1.0 / jnp.sqrt(float(fan_in))
    return jax.random.uniform(key, shape, jnp.float32, -bound, bound)


def init_params(key, h, w, num_classes=NUM_CLASSES, num_predictions=NUM_PREDICTIONS):
    ks = jax.random.split(key, 12)
    flat_size = 128 * (h // 8) * (w // 8)   # module: 128*32*32 for 256x256 input

    params = {
        "conv1_w": _uniform(ks[0], (32, 3, 3, 3), 3 * 9),
        "conv1_b": _uniform(ks[1], (32,), 3 * 9),
        "conv2_w": _uniform(ks[2], (64, 32, 3, 3), 32 * 9),
        "conv2_b": _uniform(ks[3], (64,), 32 * 9),
        "conv3_w": _uniform(ks[4], (128, 64, 3, 3), 64 * 9),
        "conv3_b": _uniform(ks[5], (128,), 64 * 9),
        "fc_w": _uniform(ks[6], (1024, flat_size), flat_size),
        "fc_b": _uniform(ks[7], (1024,), flat_size),
        "bbox_w": _uniform(ks[8], (num_predictions * 4, 1024), 1024),
        "cls_w": _uniform(ks[9], (num_predictions * num_classes, 1024), 1024),
        "cls_b": _uniform(ks[10], (num_predictions * num_classes,), 1024),
    }
    # initialize_bbox_head(): bias = sigmoid(predefined boxes), as in the module
    initial_boxes = jnp.array(
        [0.2, 0.2, 0.4, 0.4,
         0.6, 0.2, 0.8, 0.4,
         0.2, 0.6, 0.4, 0.8,
         0.6, 0.6, 0.8, 0.8,
         0.4, 0.4, 0.6, 0.6], dtype=jnp.float32)
    params["bbox_b"] = jax.nn.sigmoid(initial_boxes)
    return params


# ---------------------------------------------------------------------------
# Forward pass
# ---------------------------------------------------------------------------
def simple_object_detector_forward(x_nchw, params,
                                   num_classes=NUM_CLASSES,
                                   num_predictions=NUM_PREDICTIONS):
    n = x_nchw.shape[0]
    x = jnp.transpose(x_nchw, (0, 2, 3, 1))   # NCHW -> NHWC for conv stages

    # features: [conv3x3 + ReLU + maxpool2x2] x 3 — each stage is ONE kernel
    x = conv3x3_relu_pool(x, params["conv1_w"], params["conv1_b"])
    x = conv3x3_relu_pool(x, params["conv2_w"], params["conv2_b"])
    x = conv3x3_relu_pool(x, params["conv3_w"], params["conv3_b"])

    # flatten in PyTorch (C, H, W) order
    x = jnp.transpose(x, (0, 3, 1, 2)).reshape(n, -1)

    # fc + ReLU (tiled, K-last, accumulate-in-output)
    x = linear(x, params["fc_w"], params["fc_b"], activation="relu")

    # fused heads: one lane-dense (padded to 128 cols) matmul; sigmoid on the
    # bbox columns inside the kernel, split back in the wrapper.
    n_bbox = num_predictions * 4
    n_cls = num_predictions * num_classes
    pad = (-(n_bbox + n_cls)) % 128
    w_heads = jnp.pad(
        jnp.concatenate([params["bbox_w"], params["cls_w"]], axis=0),
        ((0, pad), (0, 0)))
    b_heads = jnp.pad(
        jnp.concatenate([params["bbox_b"], params["cls_b"]], axis=0),
        ((0, pad),))
    heads = linear(x, w_heads, b_heads, activation=None, sigmoid_cols=n_bbox)

    bbox = heads[:, :n_bbox].reshape(-1, num_predictions, 4)
    cls_logits = heads[:, n_bbox:n_bbox + n_cls].reshape(-1, num_predictions,
                                                         num_classes)
    return bbox, cls_logits


if __name__ == "__main__":
    key = jax.random.PRNGKey(0)
    k_param, k_x = jax.random.split(key)

    B, C, H, W = 2, 3, 32, 32   # small spatial size (module's 256x256 scaled down)
    params = init_params(k_param, H, W)
    x = jax.random.normal(k_x, (B, C, H, W), dtype=jnp.float32)

    bbox, cls_logits = simple_object_detector_forward(x, params)
    jax.block_until_ready((bbox, cls_logits))

    assert bbox.shape == (B, NUM_PREDICTIONS, 4), bbox.shape
    assert cls_logits.shape == (B, NUM_PREDICTIONS, NUM_CLASSES), cls_logits.shape
    assert bool(jnp.all((bbox >= 0.0) & (bbox <= 1.0)))  # sigmoid output range
    assert bool(jnp.all(jnp.isfinite(cls_logits)))

    print("KERNEL_OK")
</pallas_src>

<mosaic_0001>
module attributes {stable_mosaic.version = 11 : i64} {
  func.func @conv_pool_kernel(%arg0: i32, %arg1: i32, %arg2: memref<1x1024x27xf32, #tpu.memory_space<vmem>>, %arg3: memref<27x32xf32, #tpu.memory_space<vmem>>, %arg4: memref<1x32xf32, #tpu.memory_space<vmem>>, %arg5: memref<1x16x16x32xf32, #tpu.memory_space<vmem>>) attributes {dimension_semantics = [#tpu.dimension_semantics<parallel>, #tpu.dimension_semantics<parallel>], iteration_bounds = array<i64: 2, 1>, scalar_prefetch = 0 : i64, scratch_operands = 0 : i64, tpu.core_type = #tpu.core_type<tc>, window_params = [{transform_indices = @transform_0, window_bounds = array<i64: 1, 1024, 27>}, {pipeline_mode = #tpu.pipeline_mode<synchronous>, transform_indices = @transform_1, window_bounds = array<i64: 27, 32>}, {pipeline_mode = #tpu.pipeline_mode<synchronous>, transform_indices = @transform_2, window_bounds = array<i64: 1, 32>}, {transform_indices = @transform_3, window_bounds = array<i64: 1, 16, 16, 32>}]} {
    %c0 = arith.constant 0 : index
    %c0_0 = arith.constant 0 : index
    %c0_1 = arith.constant 0 : index
    %0 = vector.load %arg2[%c0, %c0_0, %c0_1] : memref<1x1024x27xf32, #tpu.memory_space<vmem>>, vector<1x1024x27xf32>
    %1 = vector.shape_cast %0 : vector<1x1024x27xf32> to vector<1024x27xf32>
    %c0_2 = arith.constant 0 : index
    %c0_3 = arith.constant 0 : index
    %2 = vector.load %arg3[%c0_2, %c0_3] : memref<27x32xf32, #tpu.memory_space<vmem>>, vector<27x32xf32>
    %cst = arith.constant dense<0.000000e+00> : vector<1024x32xf32>
    %3 = tpu.matmul %1, %2, %cst {dimension_numbers = #tpu.dot_dimension_numbers<[1], [0], [0], [1], [0, 0, 1, 1], [], []>} : vector<1024x27xf32>, vector<27x32xf32>, vector<1024x32xf32> -> vector<1024x32xf32>
    %c0_4 = arith.constant 0 : index
    %c0_5 = arith.constant 0 : index
    %4 = vector.load %arg4[%c0_4, %c0_5] : memref<1x32xf32, #tpu.memory_space<vmem>>, vector<1x32xf32>
    %5 = vector.broadcast %4 : vector<1x32xf32> to vector<1024x32xf32>
    %6 = arith.addf %3, %5 : vector<1024x32xf32>
    %cst_6 = arith.constant 0.000000e+00 : f32
    %7 = vector.broadcast %cst_6 : f32 to vector<1024x32xf32>
    %8 = arith.maximumf %6, %7 : vector<1024x32xf32>
    %9 = vector.shape_cast %8 : vector<1024x32xf32> to vector<32x2x16x32xf32>
    %10 = vector.extract_strided_slice %9 {offsets = [0, 0, 0, 0], sizes = [32, 1, 16, 32], strides = [1, 1, 1, 1]} : vector<32x2x16x32xf32> to vector<32x1x16x32xf32>
    %11 = vector.shape_cast %10 : vector<32x1x16x32xf32> to vector<32x16x32xf32>
    %12 = vector.extract_strided_slice %9 {offsets = [0, 1, 0, 0], sizes = [32, 1, 16, 32], strides = [1, 1, 1, 1]} : vector<32x2x16x32xf32> to vector<32x1x16x32xf32>
    %13 = vector.shape_cast %12 : vector<32x1x16x32xf32> to vector<32x16x32xf32>
    %14 = arith.maximumf %11, %13 : vector<32x16x32xf32>
    %15 = vector.shape_cast %14 : vector<32x16x32xf32> to vector<16x2x16x32xf32>
    %16 = vector.extract_strided_slice %15 {offsets = [0, 0, 0, 0], sizes = [16, 1, 16, 32], strides = [1, 1, 1, 1]} : vector<16x2x16x32xf32> to vector<16x1x16x32xf32>
    %17 = vector.shape_cast %16 : vector<16x1x16x32xf32> to vector<16x16x32xf32>
    %18 = vector.extract_strided_slice %15 {offsets = [0, 1, 0, 0], sizes = [16, 1, 16, 32], strides = [1, 1, 1, 1]} : vector<16x2x16x32xf32> to vector<16x1x16x32xf32>
    %19 = vector.shape_cast %18 : vector<16x1x16x32xf32> to vector<16x16x32xf32>
    %20 = arith.maximumf %17, %19 : vector<16x16x32xf32>
    %c0_7 = arith.constant 0 : index
    %c0_8 = arith.constant 0 : index
    %c0_9 = arith.constant 0 : index
    %c0_10 = arith.constant 0 : index
    %21 = vector.load %arg5[%c0_7, %c0_8, %c0_9, %c0_10] : memref<1x16x16x32xf32, #tpu.memory_space<vmem>>, vector<1x16x16x32xf32>
    %22 = vector.shape_cast %21 : vector<1x16x16x32xf32> to vector<16x16x32xf32>
    %23 = vector.shape_cast %20 : vector<16x16x32xf32> to vector<1x16x16x32xf32>
    tpu.vector_store %arg5[%c0_7, %c0_8, %c0_9, %c0_10], %23 {strides = array<i32>} : memref<1x16x16x32xf32, #tpu.memory_space<vmem>>, vector<1x16x16x32xf32>,
    return
  }
  func.func @transform_0(%arg0: i32, %arg1: i32) -> (i32, i32, i32) {
    %c0_i32 = arith.constant 0 : i32
    %c0_i32_0 = arith.constant 0 : i32
    return %arg0, %arg1, %c0_i32 : i32, i32, i32
  }
  func.func @transform_1(%arg0: i32, %arg1: i32) -> (i32, i32) {
    %c0_i32 = arith.constant 0 : i32
    %c0_i32_0 = arith.constant 0 : i32
    %c0_i32_1 = arith.constant 0 : i32
    return %c0_i32, %c0_i32_0 : i32, i32
  }
  func.func @transform_2(%arg0: i32, %arg1: i32) -> (i32, i32) {
    %c0_i32 = arith.constant 0 : i32
    %c0_i32_0 = arith.constant 0 : i32
    %c0_i32_1 = arith.constant 0 : i32
    return %c0_i32, %c0_i32_0 : i32, i32
  }
  func.func @transform_3(%arg0: i32, %arg1: i32) -> (i32, i32, i32, i32) {
    %c0_i32 = arith.constant 0 : i32
    %c0_i32_0 = arith.constant 0 : i32
    %c0_i32_1 = arith.constant 0 : i32
    return %arg0, %arg1, %c0_i32, %c0_i32_0 : i32, i32, i32, i32
  }
}

</mosaic_0001>

<llo_original>
// kernel: tpu_custom_call.1
$region0: #{tpu_custom_call.1}
  #allocation0 [shape = 'u32[]', space=smem, size = 0x4, offset = 0x4, fixed_abs, tag = 'smem constant byte address 0x4 - core index']
  #allocation1 [shape = 'u32[144,128]{1,0:T(1,128)}', space=vmem, size = 0x12000, scoped, tag = 'internal scratch']
  %s0 = inlined_call_operand.vmem [shape: f32[2,1024,27], index: 0, kind: input, shape index: {}]
  %s1 = inlined_call_operand.vmem [shape: f32[27,32], index: 1, kind: input, shape index: {}]
  %s2 = inlined_call_operand.vmem [shape: f32[1,32], index: 2, kind: input, shape index: {}]
  %s3 = inlined_call_operand.hbm [shape: f32[2,16,16,32], index: 3, kind: output, shape index: {}]
  %s4 = sld [smem:[#allocation0]]
  $region45: #{tpu_custom_call.1} parent=0
    _
  %s6 = ssub.s32 1, %s4
  %s7 = scalar_select 0, %s6, %s4
  $region1: #{tpu_custom_call.1} parent=0
    #allocation2 [shape = 'u8[262144]{0}', space=vmem, size = 0x40000, scoped, tag = 'output window, operand 0']
    #allocation3 [shape = 's32[2]{0}', space=sflag, size = 0x8, scoped, tag = 'scoped memory for tpu_custom_call.1']
    %8 = vsyncpa [#allocation3], 0
    %s9 = scalar_lea.sflag [#allocation3], 1
    %10 = vsyncpa %s9, 0
    loop: start=0, step=1, limit=4
    $region2: #{tpu_custom_call.1} parent=1 // loop_pre_header
      _
    $region3: #{tpu_custom_call.1} parent=1 // loop_header
      %s12 = sphi 0, %s16
      %p13 = scmp.ge.s32.totalorder %s12, 4
      %s19 = sphi 0, %s31
      %s20 = sphi 0, %s27
      %s21 = sphi 0, %s19
      %s22 = sphi 0, %s20
      %s23 = sphi 0, %s21
      %s24 = sphi 0, %s22
      %s36 = sphi 0, %s38
      %s39 = sphi 0, %s36
      %s40 = sphi 0, %s39
      %s56 = sphi 0, %s40
      %s60 = sphi 0, %s60
      %s62 = sphi 0, %s60
      %s63 = sphi 0, %s62
      %s77 = sphi 0, %s63
      %s81 = sphi 0, %s81
      %s83 = sphi 0, %s81
      %s84 = sphi 0, %s83
      %s98 = sphi 0, %s84
      %s106 = sphi 0, %s108
      %s109 = sphi 0, %s106
      %s110 = sphi 0, %s109
      %s126 = sphi 0, %s110
    $region4: #{tpu_custom_call.1} parent=1 // loop_header_branch
      %15 = sbr.rel (%p13) target = $region8
    $region5: #{tpu_custom_call.1} parent=1 // loop_body
      %s17 = ssub.s32 %s12, 1
      %s18 = ssub.s32 %s12, 2
      %s25 = sadd.s32 1, %s20
      %p26 = scmp.ge.s32.totalorder %s25, 1
      %s27 = scalar_select %p26, 0, %s25
      %s28 = sadd.s32 1, %s19
      %s29 = scalar_select %p26, %s28, %s19
      %p30 = scmp.ge.s32.totalorder %s29, 2
      %s31 = scalar_select %p30, 0, %s29
      %s32 = ssub.s32 %s19, %s31
      %s33 = ssub.s32 %s20, %s27
      %s34 = sor.u32 %s32, %s33
      %p35 = scmp.eq.s32.totalorder %s34, 0
      %s37 = sadd.s32 %s36, 1
      %s38 = scalar_select %p35, %s36, %s37
      %p41 = pneg %p35
      %p42 = scmp.eq.s32.totalorder %s12, 1
      %p43 = por %p41, %p42
      %p44 = scmp.ne.s32.totalorder %s36, %s39
      %p45 = scmp.eq.s32.totalorder %s12, 0
      %p46 = por %p44, %p45
      %p47 = scmp.ne.s32.totalorder %s36, %s39
      %p48 = scmp.eq.s32.totalorder %s17, 1
      %p49 = por %p47, %p48
      %p50 = scmp.ne.s32.totalorder %s39, %s40
      %p51 = scmp.eq.s32.totalorder %s17, 0
      %p52 = por %p50, %p51
      %p53 = scmp.ne.s32.totalorder %s39, %s40
      %p54 = scmp.eq.s32.totalorder %s18, 1
      %p55 = por %p53, %p54
      %p57 = scmp.ne.s32.totalorder %s40, %s56
      %p58 = scmp.eq.s32.totalorder %s18, 0
      %p59 = por %p57, %p58
      %s61 = sadd.s32 %s60, 1
      %p64 = scmp.eq.s32.totalorder %s12, 1
      %p65 = scmp.ne.s32.totalorder %s60, %s62
      %p66 = scmp.eq.s32.totalorder %s12, 0
      %p67 = por %p65, %p66
      %p68 = scmp.ne.s32.totalorder %s60, %s62
      %p69 = scmp.eq.s32.totalorder %s17, 1
      %p70 = por %p68, %p69
      %p71 = scmp.ne.s32.totalorder %s62, %s63
      %p72 = scmp.eq.s32.totalorder %s17, 0
      %p73 = por %p71, %p72
      %p74 = scmp.ne.s32.totalorder %s62, %s63
      %p75 = scmp.eq.s32.totalorder %s18, 1
      %p76 = por %p74, %p75
      %p78 = scmp.ne.s32.totalorder %s63, %s77
      %p79 = scmp.eq.s32.totalorder %s18, 0
      %p80 = por %p78, %p79
      %s82 = sadd.s32 %s81, 1
      %p85 = scmp.eq.s32.totalorder %s12, 1
      %p86 = scmp.ne.s32.totalorder %s81, %s83
      %p87 = scmp.eq.s32.totalorder %s12, 0
      %p88 = por %p86, %p87
      %p89 = scmp.ne.s32.totalorder %s81, %s83
      %p90 = scmp.eq.s32.totalorder %s17, 1
      %p91 = por %p89, %p90
      %p92 = scmp.ne.s32.totalorder %s83, %s84
      %p93 = scmp.eq.s32.totalorder %s17, 0
      %p94 = por %p92, %p93
      %p95 = scmp.ne.s32.totalorder %s83, %s84
      %p96 = scmp.eq.s32.totalorder %s18, 1
      %p97 = por %p95, %p96
      %p99 = scmp.ne.s32.totalorder %s84, %s98
      %p100 = scmp.eq.s32.totalorder %s18, 0
      %p101 = por %p99, %p100
      %s102 = ssub.s32 %s19, %s31
      %s103 = ssub.s32 %s20, %s27
      %s104 = sor.u32 %s102, %s103
      %p105 = scmp.eq.s32.totalorder %s104, 0
      %s107 = sadd.s32 %s106, 1
      %s108 = scalar_select %p105, %s106, %s107
      %p111 = pneg %p105
      %p112 = scmp.eq.s32.totalorder %s12, 1
      %p113 = por %p111, %p112
      %p114 = scmp.ne.s32.totalorder %s106, %s109
      %p115 = scmp.eq.s32.totalorder %s12, 0
      %p116 = por %p114, %p115
      %p117 = scmp.ne.s32.totalorder %s106, %s109
      %p118 = scmp.eq.s32.totalorder %s17, 1
      %p119 = por %p117, %p118
      %p120 = scmp.ne.s32.totalorder %s109, %s110
      %p121 = scmp.eq.s32.totalorder %s17, 0
      %p122 = por %p120, %p121
      %p123 = scmp.ne.s32.totalorder %s109, %s110
      %p124 = scmp.eq.s32.totalorder %s18, 1
      %p125 = por %p123, %p124
      %p127 = scmp.ne.s32.totalorder %s110, %s126
      %p128 = scmp.eq.s32.totalorder %s18, 0
      %p129 = por %p127, %p128
      %p130 = scmp.le.s32.totalorder 1, %s12
      %p131 = scmp.lt.s32.totalorder %s12, 3
      %p132 = pnand %p130, %p131
      %p133 = pneg %p132
      // Predicated region
      $region9: #{tpu_custom_call.1} parent=5 // pred_check
        _
      $region10: #{tpu_custom_call.1} parent=5 // pred_check_branch
        %135 = sbr.rel (%p132) target = $region12
      $region11: #{tpu_custom_call.1} parent=5 // pred_region
        %s136 = ssub.s32 %s12, 1
        // Predicated region
        $region13: #{tpu_custom_call.1} parent=11 // pred_check
          %p137 = pneg %p73
        $region14: #{tpu_custom_call.1} parent=11 // pred_check_branch
          %139 = sbr.rel (%p137) target = $region16
        $region15: #{tpu_custom_call.1} parent=11 // pred_region
          _
        $region16: #{tpu_custom_call.1} parent=11 // pred_fallthru
          _
        // Predicated region
        $region17: #{tpu_custom_call.1} parent=11 // pred_check
          %p140 = pneg %p94
        $region18: #{tpu_custom_call.1} parent=11 // pred_check_branch
          %142 = sbr.rel (%p140) target = $region20
        $region19: #{tpu_custom_call.1} parent=11 // pred_region
          _
        $region20: #{tpu_custom_call.1} parent=11 // pred_fallthru
          _
      $region12: #{tpu_custom_call.1} parent=5 // pred_fallthru
        _
      %p143 = scmp.lt.s32.totalorder %s12, 2
      // Predicated region
      $region21: #{tpu_custom_call.1} parent=5 // pred_check
        %p144 = pneg %p143
      $region22: #{tpu_custom_call.1} parent=5 // pred_check_branch
        %146 = sbr.rel (%p144) target = $region24
      $region23: #{tpu_custom_call.1} parent=5 // pred_region
        // Predicated region
        $region25: #{tpu_custom_call.1} parent=23 // pred_check
          %p147 = pneg %p46
        $region26: #{tpu_custom_call.1} parent=23 // pred_check_branch
          %149 = sbr.rel (%p147) target = $region28
        $region27: #{tpu_custom_call.1} parent=23 // pred_region
          %s150 = smul.u32 128, %s20
          %p151 = scmp.lt.s32.totalorder %s19, 1
          %s152 = scalar_select %p151, %s19, 1
          %p153 = scmp.lt.s32.totalorder %s150, 127
          %s154 = scalar_select %p153, %s150, 127
          %s155 = smul.addr %s152, 128
          %s156 = sadd.s32 %s154, %s155
          %s157 = smul.addr %s156, 8
          %s158 = scalar_lea.vmem %s0, %s157
          %s159 = smul.u32 128, %s20
        $region28: #{tpu_custom_call.1} parent=23 // pred_fallthru
          _
      $region24: #{tpu_custom_call.1} parent=5 // pred_fallthru
        _
      %p160 = scmp.le.s32.totalorder 1, %s12
      %p161 = scmp.lt.s32.totalorder %s12, 3
      %p162 = pnand %p160, %p161
      %p163 = pneg %p162
      // Predicated region
      $region29: #{tpu_custom_call.1} parent=5 // pred_check
        _
      $region30: #{tpu_custom_call.1} parent=5 // pred_check_branch
        %165 = sbr.rel (%p162) target = $region32
      $region31: #{tpu_custom_call.1} parent=5 // pred_region
        %s166 = ssub.s32 %s12, 1
        %s167 = smul.u32 128, %s22
        %p168 = scmp.lt.s32.totalorder %s21, 1
        %s169 = scalar_select %p168, %s21, 1
        %p170 = scmp.lt.s32.totalorder %s167, 127
        %s171 = scalar_select %p170, %s167, 127
        %s172 = smul.addr %s169, 128
        %s173 = sadd.s32 %s171, %s172
        %s174 = smul.addr %s173, 8
        %s175 = scalar_lea.vmem %s0, %s174
        %p176 = pneg %p52
        %p177 = pneg %p49
        %p178 = pneg %p73
        %p179 = pneg %p70
        %p180 = pneg %p94
        %p181 = pneg %p91
        %p182 = pneg %p122
        %p183 = pneg %p119
        %s184 = sand.u32 %s109, 1
        %s185 = scalar_lea.sflag [#allocation3], %s184
        %s186 = sand.u32 %s109, 1
        %s187 = smul.addr %s186, 256
        %s188 = scalar_lea.vmem [#allocation2], %s187
        %s189 = smul.u32 128, %s22
        %p190 = scmp.lt.s32.totalorder %s21, 1
        %s191 = scalar_select %p190, %s21, 1
        %p192 = scmp.lt.s32.totalorder %s189, 127
        %s193 = scalar_select %p192, %s189, 127
        %s194 = smul.addr %s191, 128
        %s195 = sadd.s32 %s193, %s194
        %s196 = smul.addr %s195, 8
        %s197 = scalar_lea.vmem %s0, %s196
        %s198 = smul.u32 128, %s22
        %s199 = smul.u32 16, %s22
        %v200 = vld [vmem:[%s197] sm:$0xff]
        %v201 = vld [vmem:[%s197 + $0x8] sm:$0xff]
        %v202 = vld [vmem:[%s197 + $0x10] sm:$0xff]
        %v203 = vld [vmem:[%s197 + $0x18] sm:$0xff]
        %v204 = vld [vmem:[%s197 + $0x20] sm:$0xff]
        %v205 = vld [vmem:[%s197 + $0x28] sm:$0xff]
        %v206 = vld [vmem:[%s197 + $0x30] sm:$0xff]
        %v207 = vld [vmem:[%s197 + $0x38] sm:$0xff]
        %v208 = vld [vmem:[%s197 + $0x40] sm:$0xff]
        %v209 = vld [vmem:[%s197 + $0x48] sm:$0xff]
        %v210 = vld [vmem:[%s197 + $0x50] sm:$0xff]
        %v211 = vld [vmem:[%s197 + $0x58] sm:$0xff]
        %v212 = vld [vmem:[%s197 + $0x60] sm:$0xff]
        %v213 = vld [vmem:[%s197 + $0x68] sm:$0xff]
        %v214 = vld [vmem:[%s197 + $0x70] sm:$0xff]
        %v215 = vld [vmem:[%s197 + $0x78] sm:$0xff]
        %v216 = vld [vmem:[%s197 + $0x80] sm:$0xff]
        %v217 = vld [vmem:[%s197 + $0x88] sm:$0xff]
        %v218 = vld [vmem:[%s197 + $0x90] sm:$0xff]
        %v219 = vld [vmem:[%s197 + $0x98] sm:$0xff]
        %v220 = vld [vmem:[%s197 + $0xa0] sm:$0xff]
        %v221 = vld [vmem:[%s197 + $0xa8] sm:$0xff]
        %v222 = vld [vmem:[%s197 + $0xb0] sm:$0xff]
        %v223 = vld [vmem:[%s197 + $0xb8] sm:$0xff]
        %v224 = vld [vmem:[%s197 + $0xc0] sm:$0xff]
        %v225 = vld [vmem:[%s197 + $0xc8] sm:$0xff]
        %v226 = vld [vmem:[%s197 + $0xd0] sm:$0xff]
        %v227 = vld [vmem:[%s197 + $0xd8] sm:$0xff]
        %v228 = vld [vmem:[%s197 + $0xe0] sm:$0xff]
        %v229 = vld [vmem:[%s197 + $0xe8] sm:$0xff]
        %v230 = vld [vmem:[%s197 + $0xf0] sm:$0xff]
        %v231 = vld [vmem:[%s197 + $0xf8] sm:$0xff]
        %v232 = vld [vmem:[%s197 + $0x100] sm:$0xff]
        %v233 = vld [vmem:[%s197 + $0x108] sm:$0xff]
        %v234 = vld [vmem:[%s197 + $0x110] sm:$0xff]
        %v235 = vld [vmem:[%s197 + $0x118] sm:$0xff]
        %v236 = vld [vmem:[%s197 + $0x120] sm:$0xff]
        %v237 = vld [vmem:[%s197 + $0x128] sm:$0xff]
        %v238 = vld [vmem:[%s197 + $0x130] sm:$0xff]
        %v239 = vld [vmem:[%s197 + $0x138] sm:$0xff]
        %v240 = vld [vmem:[%s197 + $0x140] sm:$0xff]
        %v241 = vld [vmem:[%s197 + $0x148] sm:$0xff]
        %v242 = vld [vmem:[%s197 + $0x150] sm:$0xff]
        %v243 = vld [vmem:[%s197 + $0x158] sm:$0xff]
        %v244 = vld [vmem:[%s197 + $0x160] sm:$0xff]
        %v245 = vld [vmem:[%s197 + $0x168] sm:$0xff]
        %v246 = vld [vmem:[%s197 + $0x170] sm:$0xff]
        %v247 = vld [vmem:[%s197 + $0x178] sm:$0xff]
        %v248 = vld [vmem:[%s197 + $0x180] sm:$0xff]
        %v249 = vld [vmem:[%s197 + $0x188] sm:$0xff]
        %v250 = vld [vmem:[%s197 + $0x190] sm:$0xff]
        %v251 = vld [vmem:[%s197 + $0x198] sm:$0xff]
        %v252 = vld [vmem:[%s197 + $0x1a0] sm:$0xff]
        %v253 = vld [vmem:[%s197 + $0x1a8] sm:$0xff]
        %v254 = vld [vmem:[%s197 + $0x1b0] sm:$0xff]
        %v255 = vld [vmem:[%s197 + $0x1b8] sm:$0xff]
        %v256 = vld [vmem:[%s197 + $0x1c0] sm:$0xff]
        %v257 = vld [vmem:[%s197 + $0x1c8] sm:$0xff]
        %v258 = vld [vmem:[%s197 + $0x1d0] sm:$0xff]
        %v259 = vld [vmem:[%s197 + $0x1d8] sm:$0xff]
        %v260 = vld [vmem:[%s197 + $0x1e0] sm:$0xff]
        %v261 = vld [vmem:[%s197 + $0x1e8] sm:$0xff]
        %v262 = vld [vmem:[%s197 + $0x1f0] sm:$0xff]
        %v263 = vld [vmem:[%s197 + $0x1f8] sm:$0xff]
        %v264 = vld [vmem:[%s197 + $0x200] sm:$0xff]
        %v265 = vld [vmem:[%s197 + $0x208] sm:$0xff]
        %v266 = vld [vmem:[%s197 + $0x210] sm:$0xff]
        %v267 = vld [vmem:[%s197 + $0x218] sm:$0xff]
        %v268 = vld [vmem:[%s197 + $0x220] sm:$0xff]
        %v269 = vld [vmem:[%s197 + $0x228] sm:$0xff]
        %v270 = vld [vmem:[%s197 + $0x230] sm:$0xff]
        %v271 = vld [vmem:[%s197 + $0x238] sm:$0xff]
        %v272 = vld [vmem:[%s197 + $0x240] sm:$0xff]
        %v273 = vld [vmem:[%s197 + $0x248] sm:$0xff]
        %v274 = vld [vmem:[%s197 + $0x250] sm:$0xff]
        %v275 = vld [vmem:[%s197 + $0x258] sm:$0xff]
        %v276 = vld [vmem:[%s197 + $0x260] sm:$0xff]
        %v277 = vld [vmem:[%s197 + $0x268] sm:$0xff]
        %v278 = vld [vmem:[%s197 + $0x270] sm:$0xff]
        %v279 = vld [vmem:[%s197 + $0x278] sm:$0xff]
        %v280 = vld [vmem:[%s197 + $0x280] sm:$0xff]
        %v281 = vld [vmem:[%s197 + $0x288] sm:$0xff]
        %v282 = vld [vmem:[%s197 + $0x290] sm:$0xff]
        %v283 = vld [vmem:[%s197 + $0x298] sm:$0xff]
        %v284 = vld [vmem:[%s197 + $0x2a0] sm:$0xff]
        %v285 = vld [vmem:[%s197 + $0x2a8] sm:$0xff]
        %v286 = vld [vmem:[%s197 + $0x2b0] sm:$0xff]
        %v287 = vld [vmem:[%s197 + $0x2b8] sm:$0xff]
        %v288 = vld [vmem:[%s197 + $0x2c0] sm:$0xff]
        %v289 = vld [vmem:[%s197 + $0x2c8] sm:$0xff]
        %v290 = vld [vmem:[%s197 + $0x2d0] sm:$0xff]
        %v291 = vld [vmem:[%s197 + $0x2d8] sm:$0xff]
        %v292 = vld [vmem:[%s197 + $0x2e0] sm:$0xff]
        %v293 = vld [vmem:[%s197 + $0x2e8] sm:$0xff]
        %v294 = vld [vmem:[%s197 + $0x2f0] sm:$0xff]
        %v295 = vld [vmem:[%s197 + $0x2f8] sm:$0xff]
        %v296 = vld [vmem:[%s197 + $0x300] sm:$0xff]
        %v297 = vld [vmem:[%s197 + $0x308] sm:$0xff]
        %v298 = vld [vmem:[%s197 + $0x310] sm:$0xff]
        %v299 = vld [vmem:[%s197 + $0x318] sm:$0xff]
        %v300 = vld [vmem:[%s197 + $0x320] sm:$0xff]
        %v301 = vld [vmem:[%s197 + $0x328] sm:$0xff]
        %v302 = vld [vmem:[%s197 + $0x330] sm:$0xff]
        %v303 = vld [vmem:[%s197 + $0x338] sm:$0xff]
        %v304 = vld [vmem:[%s197 + $0x340] sm:$0xff]
        %v305 = vld [vmem:[%s197 + $0x348] sm:$0xff]
        %v306 = vld [vmem:[%s197 + $0x350] sm:$0xff]
        %v307 = vld [vmem:[%s197 + $0x358] sm:$0xff]
        %v308 = vld [vmem:[%s197 + $0x360] sm:$0xff]
        %v309 = vld [vmem:[%s197 + $0x368] sm:$0xff]
        %v310 = vld [vmem:[%s197 + $0x370] sm:$0xff]
        %v311 = vld [vmem:[%s197 + $0x378] sm:$0xff]
        %v312 = vld [vmem:[%s197 + $0x380] sm:$0xff]
        %v313 = vld [vmem:[%s197 + $0x388] sm:$0xff]
        %v314 = vld [vmem:[%s197 + $0x390] sm:$0xff]
        %v315 = vld [vmem:[%s197 + $0x398] sm:$0xff]
        %v316 = vld [vmem:[%s197 + $0x3a0] sm:$0xff]
        %v317 = vld [vmem:[%s197 + $0x3a8] sm:$0xff]
        %v318 = vld [vmem:[%s197 + $0x3b0] sm:$0xff]
        %v319 = vld [vmem:[%s197 + $0x3b8] sm:$0xff]
        %v320 = vld [vmem:[%s197 + $0x3c0] sm:$0xff]
        %v321 = vld [vmem:[%s197 + $0x3c8] sm:$0xff]
        %v322 = vld [vmem:[%s197 + $0x3d0] sm:$0xff]
        %v323 = vld [vmem:[%s197 + $0x3d8] sm:$0xff]
        %v324 = vld [vmem:[%s197 + $0x3e0] sm:$0xff]
        %v325 = vld [vmem:[%s197 + $0x3e8] sm:$0xff]
        %v326 = vld [vmem:[%s197 + $0x3f0] sm:$0xff]
        %v327 = vld [vmem:[%s197 + $0x3f8] sm:$0xff]
        %v328 = vld [vmem:[%s1] sm:$0xff]
        %v329 = vld [vmem:[%s1 + $0x8] sm:$0xff]
        %v330 = vld [vmem:[%s1 + $0x10] sm:$0xff]
        %v331 = vld [vmem:[%s1 + $0x18] sm:$0x7]
        %v332 = vld [vmem:[%s2] sm:$0x1]
        %v334 = vlaneseq
        %v335 = vshrl.u32 %v334, 7
        %v336 = vsub.s32 0, %v335
        %v337 = vrot.slane %v332, %v336
        %vm339 = vcmask 220160
        %v341 = vsel %vm339, %v200, 0
        %v344 = vsel %vm339, %v201, 0
        %v347 = vsel %vm339, %v202, 0
        %v350 = vsel %vm339, %v203, 0
        %v353 = vsel %vm339, %v204, 0
        %v356 = vsel %vm339, %v205, 0
        %v359 = vsel %vm339, %v206, 0
        %v362 = vsel %vm339, %v207, 0
        %v365 = vsel %vm339, %v208, 0
        %v368 = vsel %vm339, %v209, 0
        %v371 = vsel %vm339, %v210, 0
        %v374 = vsel %vm339, %v211, 0
        %v377 = vsel %vm339, %v212, 0
        %v380 = vsel %vm339, %v213, 0
        %v383 = vsel %vm339, %v214, 0
        %v386 = vsel %vm339, %v215, 0
        %v389 = vsel %vm339, %v216, 0
        %v392 = vsel %vm339, %v217, 0
        %v395 = vsel %vm339, %v218, 0
        %v398 = vsel %vm339, %v219, 0
        %v401 = vsel %vm339, %v220, 0
        %v404 = vsel %vm339, %v221, 0
        %v407 = vsel %vm339, %v222, 0
        %v410 = vsel %vm339, %v223, 0
        %v413 = vsel %vm339, %v224, 0
        %v416 = vsel %vm339, %v225, 0
        %v419 = vsel %vm339, %v226, 0
        %v422 = vsel %vm339, %v227, 0
        %v425 = vsel %vm339, %v228, 0
        %v428 = vsel %vm339, %v229, 0
        %v431 = vsel %vm339, %v230, 0
        %v434 = vsel %vm339, %v231, 0
        %v437 = vsel %vm339, %v232, 0
        %v440 = vsel %vm339, %v233, 0
        %v443 = vsel %vm339, %v234, 0
        %v446 = vsel %vm339, %v235, 0
        %v449 = vsel %vm339, %v236, 0
        %v452 = vsel %vm339, %v237, 0
        %v455 = vsel %vm339, %v238, 0
        %v458 = vsel %vm339, %v239, 0
        %v461 = vsel %vm339, %v240, 0
        %v464 = vsel %vm339, %v241, 0
        %v467 = vsel %vm339, %v242, 0
        %v470 = vsel %vm339, %v243, 0
        %v473 = vsel %vm339, %v244, 0
        %v476 = vsel %vm339, %v245, 0
        %v479 = vsel %vm339, %v246, 0
        %v482 = vsel %vm339, %v247, 0
        %v485 = vsel %vm339, %v248, 0
        %v488 = vsel %vm339, %v249, 0
        %v491 = vsel %vm339, %v250, 0
        %v494 = vsel %vm339, %v251, 0
        %v497 = vsel %vm339, %v252, 0
        %v500 = vsel %vm339, %v253, 0
        %v503 = vsel %vm339, %v254, 0
        %v506 = vsel %vm339, %v255, 0
        %v509 = vsel %vm339, %v256, 0
        %v512 = vsel %vm339, %v257, 0
        %v515 = vsel %vm339, %v258, 0
        %v518 = vsel %vm339, %v259, 0
        %v521 = vsel %vm339, %v260, 0
        %v524 = vsel %vm339, %v261, 0
        %v527 = vsel %vm339, %v262, 0
        %v530 = vsel %vm339, %v263, 0
        %v533 = vsel %vm339, %v264, 0
        %v536 = vsel %vm339, %v265, 0
        %v539 = vsel %vm339, %v266, 0
        %v542 = vsel %vm339, %v267, 0
        %v545 = vsel %vm339, %v268, 0
        %v548 = vsel %vm339, %v269, 0
        %v551 = vsel %vm339, %v270, 0
        %v554 = vsel %vm339, %v271, 0
        %v557 = vsel %vm339, %v272, 0
        %v560 = vsel %vm339, %v273, 0
        %v563 = vsel %vm339, %v274, 0
        %v566 = vsel %vm339, %v275, 0
        %v569 = vsel %vm339, %v276, 0
        %v572 = vsel %vm339, %v277, 0
        %v575 = vsel %vm339, %v278, 0
        %v578 = vsel %vm339, %v279, 0
        %v581 = vsel %vm339, %v280, 0
        %v584 = vsel %vm339, %v281, 0
        %v587 = vsel %vm339, %v282, 0
        %v590 = vsel %vm339, %v283, 0
        %v593 = vsel %vm339, %v284, 0
        %v596 = vsel %vm339, %v285, 0
        %v599 = vsel %vm339, %v286, 0
        %v602 = vsel %vm339, %v287, 0
        %v605 = vsel %vm339, %v288, 0
        %v608 = vsel %vm339, %v289, 0
        %v611 = vsel %vm339, %v290, 0
        %v614 = vsel %vm339, %v291, 0
        %v617 = vsel %vm339, %v292, 0
        %v620 = vsel %vm339, %v293, 0
        %v623 = vsel %vm339, %v294, 0
        %v626 = vsel %vm339, %v295, 0
        %v629 = vsel %vm339, %v296, 0
        %v632 = vsel %vm339, %v297, 0
        %v635 = vsel %vm339, %v298, 0
        %v638 = vsel %vm339, %v299, 0
        %v641 = vsel %vm339, %v300, 0
        %v644 = vsel %vm339, %v301, 0
        %v647 = vsel %vm339, %v302, 0
        %v650 = vsel %vm339, %v303, 0
        %v653 = vsel %vm339, %v304, 0
        %v656 = vsel %vm339, %v305, 0
        %v659 = vsel %vm339, %v306, 0
        %v662 = vsel %vm339, %v307, 0
        %v665 = vsel %vm339, %v308, 0
        %v668 = vsel %vm339, %v309, 0
        %v671 = vsel %vm339, %v310, 0
        %v674 = vsel %vm339, %v311, 0
        %v677 = vsel %vm339, %v312, 0
        %v680 = vsel %vm339, %v313, 0
        %v683 = vsel %vm339, %v314, 0
        %v686 = vsel %vm339, %v315, 0
        %v689 = vsel %vm339, %v316, 0
        %v692 = vsel %vm339, %v317, 0
        %v695 = vsel %vm339, %v318, 0
        %v698 = vsel %vm339, %v319, 0
        %v701 = vsel %vm339, %v320, 0
        %v704 = vsel %vm339, %v321, 0
        %v707 = vsel %vm339, %v322, 0
        %v710 = vsel %vm339, %v323, 0
        %v713 = vsel %vm339, %v324, 0
        %v716 = vsel %vm339, %v325, 0
        %v719 = vsel %vm339, %v326, 0
        %v722 = vsel %vm339, %v327, 0
        %vm724 = vcmask 1042432
        %v726 = vsel %vm724, %v331, 0
        %728 = vmatprep.subr.mxu0 0.0
        %729 = vmatpush1.msra.mxu0 %v328
        %730 = vmatprep.subr.mxu0 0.0
        %731 = vmatpush1.msra.mxu0 %v329
        %732 = vmatprep.subr.mxu0 0.0
        %733 = vmatpush1.msra.mxu0 %v330
        %734 = vmatprep.subr.mxu0 0.0
        %735 = vmatpush1.msra.mxu0 %v726
        %736 = vmatprep.subr.mxu0 0.0
        %737 = vmatpush1.msra.mxu0 0.0
        %738 = vmatprep.subr.mxu0 0.0
        %739 = vmatpush1.msra.mxu0 0.0
        %740 = vmatprep.subr.mxu0 0.0
        %741 = vmatpush1.msra.mxu0 0.0
        %742 = vmatprep.subr.mxu0 0.0
        %743 = vmatpush1.msra.mxu0 0.0
        %744 = vmatprep.subr.mxu0 0.0
        %745 = vmatpush1.msra.mxu0 0.0
        %746 = vmatprep.subr.mxu0 0.0
        %747 = vmatpush1.msra.mxu0 0.0
        %748 = vmatprep.subr.mxu0 0.0
        %749 = vmatpush1.msra.mxu0 0.0
        %750 = vmatprep.subr.mxu0 0.0
        %751 = vmatpush1.msra.mxu0 0.0
        %752 = vmatprep.subr.mxu0 0.0
        %753 = vmatpush1.msra.mxu0 0.0
        %754 = vmatprep.subr.mxu0 0.0
        %755 = vmatpush1.msra.mxu0 0.0
        %756 = vmatprep.subr.mxu0 0.0
        %757 = vmatpush1.msra.mxu0 0.0
        %758 = vmatprep.subr.mxu0 0.0
        %759 = vmatpush1.msra.mxu0 0.0
        %760 = vmatprep.subr.mxu0 0.0
        %761 = vmatpush1.msra.mxu0 0.0
        %762 = vmatprep.subr.mxu0 0.0
        %763 = vmatpush1.msra.mxu0 0.0
        %764 = vmatprep.subr.mxu0 0.0
        %765 = vmatpush1.msra.mxu0 0.0
        %766 = vmatprep.subr.mxu0 0.0
        %767 = vmatpush1.msra.mxu0 0.0
        %768 = vmatprep.subr.mxu0 0.0
        %769 = vmatpush1.msra.mxu0 0.0
        %770 = vmatprep.subr.mxu0 0.0
        %771 = vmatpush1.msra.mxu0 0.0
        %772 = vmatprep.subr.mxu0 0.0
        %773 = vmatpush1.msra.mxu0 0.0
        %774 = vmatprep.subr.mxu0 0.0
        %775 = vmatpush1.msra.mxu0 0.0
        %776 = vmatprep.subr.mxu0 0.0
        %777 = vmatpush1.msra.mxu0 0.0
        %778 = vmatprep.subr.mxu0 0.0
        %779 = vmatpush1.msra.mxu0 0.0
        %780 = vmatprep.subr.mxu0 0.0
        %781 = vmatpush1.msra.mxu0 0.0
        %782 = vmatprep.subr.mxu0 0.0
        %783 = vmatpush1.msra.mxu0 0.0
        %784 = vmatprep.subr.mxu0 0.0
        %785 = vmatpush1.msra.mxu0 0.0
        %786 = vmatprep.subr.mxu0 0.0
        %787 = vmatpush1.msra.mxu0 0.0
        %788 = vmatprep.subr.mxu0 0.0
        %789 = vmatpush1.msra.mxu0 0.0
        %790 = vmatprep.subr.mxu0 0.0
        %791 = vmatpush1.msra.mxu0 0.0
        %792 = vmatprep.mubr.f32.mxu0 0.0
        %793 = vmatmul.mubr.f32.gmra.mrb[0].mxu0 %v341
        %v794 = vpop.f32.mrb[0].mxu0
        %v795 = vadd.f32 %v337, %v794
        %v796 = vpop.f32.mrb[0].mxu0
        %797 = vmatprep.mubr.f32.mxu0 0.0
        %798 = vmatmul.mubr.f32.gmra.mrb[0].mxu0 %v344
        %v799 = vpop.f32.mrb[0].mxu0
        %v800 = vadd.f32 %v337, %v799
        %v801 = vpop.f32.mrb[0].mxu0
        %802 = vmatprep.mubr.f32.mxu0 0.0
        %803 = vmatmul.mubr.f32.gmra.mrb[0].mxu0 %v347
        %v804 = vpop.f32.mrb[0].mxu0
        %v805 = vadd.f32 %v337, %v804
        %v806 = vpop.f32.mrb[0].mxu0
        %807 = vmatprep.mubr.f32.mxu0 0.0
        %808 = vmatmul.mubr.f32.gmra.mrb[0].mxu0 %v350
        %v809 = vpop.f32.mrb[0].mxu0
        %v810 = vadd.f32 %v337, %v809
        %v811 = vpop.f32.mrb[0].mxu0
        %812 = vmatprep.mubr.f32.mxu0 0.0
        %813 = vmatmul.mubr.f32.gmra.mrb[0].mxu0 %v353
        %v814 = vpop.f32.mrb[0].mxu0
        %v815 = vadd.f32 %v337, %v814
        %v816 = vpop.f32.mrb[0].mxu0
        %817 = vmatprep.mubr.f32.mxu0 0.0
        %818 = vmatmul.mubr.f32.gmra.mrb[0].mxu0 %v356
        %v819 = vpop.f32.mrb[0].mxu0
        %v820 = vadd.f32 %v337, %v819
        %v821 = vpop.f32.mrb[0].mxu0
        %822 = vmatprep.mubr.f32.mxu0 0.0
        %823 = vmatmul.mubr.f32.gmra.mrb[0].mxu0 %v359
        %v824 = vpop.f32.mrb[0].mxu0
        %v825 = vadd.f32 %v337, %v824
        %v826 = vpop.f32.mrb[0].mxu0
        %827 = vmatprep.mubr.f32.mxu0 0.0
        %828 = vmatmul.mubr.f32.gmra.mrb[0].mxu0 %v362
        %v829 = vpop.f32.mrb[0].mxu0
        %v830 = vadd.f32 %v337, %v829
        %v831 = vpop.f32.mrb[0].mxu0
        %832 = vmatprep.mubr.f32.mxu0 0.0
        %833 = vmatmul.mubr.f32.gmra.mrb[0].mxu0 %v365
        %v834 = vpop.f32.mrb[0].mxu0
        %v835 = vadd.f32 %v337, %v834
        %v836 = vpop.f32.mrb[0].mxu0
        %837 = vmatprep.mubr.f32.mxu0 0.0
        %838 = vmatmul.mubr.f32.gmra.mrb[0].mxu0 %v368
        %v839 = vpop.f32.mrb[0].mxu0
        %v840 = vadd.f32 %v337, %v839
        %v841 = vpop.f32.mrb[0].mxu0
        %842 = vmatprep.mubr.f32.mxu0 0.0
        %843 = vmatmul.mubr.f32.gmra.mrb[0].mxu0 %v371
        %v844 = vpop.f32.mrb[0].mxu0
        %v845 = vadd.f32 %v337, %v844
        %v846 = vpop.f32.mrb[0].mxu0
        %847 = vmatprep.mubr.f32.mxu0 0.0
        %848 = vmatmul.mubr.f32.gmra.mrb[0].mxu0 %v374
        %v849 = vpop.f32.mrb[0].mxu0
        %v850 = vadd.f32 %v337, %v849
        %v851 = vpop.f32.mrb[0].mxu0
        %852 = vmatprep.mubr.f32.mxu0 0.0
        %853 = vmatmul.mubr.f32.gmra.mrb[0].mxu0 %v377
        %v854 = vpop.f32.mrb[0].mxu0
        %v855 = vadd.f32 %v337, %v854
        %v856 = vpop.f32.mrb[0].mxu0
        %857 = vmatprep.mubr.f32.mxu0 0.0
        %858 = vmatmul.mubr.f32.gmra.mrb[0].mxu0 %v380
        %v859 = vpop.f32.mrb[0].mxu0
        %v860 = vadd.f32 %v337, %v859
        %v861 = vpop.f32.mrb[0].mxu0
        %862 = vmatprep.mubr.f32.mxu0 0.0
        %863 = vmatmul.mubr.f32.gmra.mrb[0].mxu0 %v383
        %v864 = vpop.f32.mrb[0].mxu0
        %v865 = vadd.f32 %v337, %v864
        %v866 = vpop.f32.mrb[0].mxu0
        %867 = vmatprep.mubr.f32.mxu0 0.0
        %868 = vmatmul.mubr.f32.gmra.mrb[0].mxu0 %v386
        %v869 = vpop.f32.mrb[0].mxu0
        %v870 = vadd.f32 %v337, %v869
        %v871 = vpop.f32.mrb[0].mxu0
        %872 = vmatprep.mubr.f32.mxu0 0.0
        %873 = vmatmul.mubr.f32.gmra.mrb[0].mxu0 %v389
        %v874 = vpop.f32.mrb[0].mxu0
        %v875 = vadd.f32 %v337, %v874
        %v876 = vpop.f32.mrb[0].mxu0
        %877 = vmatprep.mubr.f32.mxu0 0.0
        %878 = vmatmul.mubr.f32.gmra.mrb[0].mxu0 %v392
        %v879 = vpop.f32.mrb[0].mxu0
        %v880 = vadd.f32 %v337, %v879
        %v881 = vpop.f32.mrb[0].mxu0
        %882 = vmatprep.mubr.f32.mxu0 0.0
        %883 = vmatmul.mubr.f32.gmra.mrb[0].mxu0 %v395
        %v884 = vpop.f32.mrb[0].mxu0
        %v885 = vadd.f32 %v337, %v884
        %v886 = vpop.f32.mrb[0].mxu0
        %887 = vmatprep.mubr.f32.mxu0 0.0
        %888 = vmatmul.mubr.f32.gmra.mrb[0].mxu0 %v398
        %v889 = vpop.f32.mrb[0].mxu0
        %v890 = vadd.f32 %v337, %v889
        %v891 = vpop.f32.mrb[0].mxu0
        %892 = vmatprep.mubr.f32.mxu0 0.0
        %893 = vmatmul.mubr.f32.gmra.mrb[0].mxu0 %v401
        %v894 = vpop.f32.mrb[0].mxu0
        %v895 = vadd.f32 %v337, %v894
        %v896 = vpop.f32.mrb[0].mxu0
        %897 = vmatprep.mubr.f32.mxu0 0.0
        %898 = vmatmul.mubr.f32.gmra.mrb[0].mxu0 %v404
        %v899 = vpop.f32.mrb[0].mxu0
        %v900 = vadd.f32 %v337, %v899
        %v901 = vpop.f32.mrb[0].mxu0
        %902 = vmatprep.mubr.f32.mxu0 0.0
        %903 = vmatmul.mubr.f32.gmra.mrb[0].mxu0 %v407
        %v904 = vpop.f32.mrb[0].mxu0
        %v905 = vadd.f32 %v337, %v904
        %v906 = vpop.f32.mrb[0].mxu0
        %907 = vmatprep.mubr.f32.mxu0 0.0
        %908 = vmatmul.mubr.f32.gmra.mrb[0].mxu0 %v410
        %v909 = vpop.f32.mrb[0].mxu0
        %v910 = vadd.f32 %v337, %v909
        %v911 = vpop.f32.mrb[0].mxu0
        %912 = vmatprep.mubr.f32.mxu0 0.0
        %913 = vmatmul.mubr.f32.gmra.mrb[0].mxu0 %v413
        %v914 = vpop.f32.mrb[0].mxu0
        %v915 = vadd.f32 %v337, %v914
        %v916 = vpop.f32.mrb[0].mxu0
        %917 = vmatprep.mubr.f32.mxu0 0.0
        %918 = vmatmul.mubr.f32.gmra.mrb[0].mxu0 %v416
        %v919 = vpop.f32.mrb[0].mxu0
        %v920 = vadd.f32 %v337, %v919
        %v921 = vpop.f32.mrb[0].mxu0
        %922 = vmatprep.mubr.f32.mxu0 0.0
        %923 = vmatmul.mubr.f32.gmra.mrb[0].mxu0 %v419
        %v924 = vpop.f32.mrb[0].mxu0
        %v925 = vadd.f32 %v337, %v924
        %v926 = vpop.f32.mrb[0].mxu0
        %927 = vmatprep.mubr.f32.mxu0 0.0
        %928 = vmatmul.mubr.f32.gmra.mrb[0].mxu0 %v422
        %v929 = vpop.f32.mrb[0].mxu0
        %v930 = vadd.f32 %v337, %v929
        %v931 = vpop.f32.mrb[0].mxu0
        %932 = vmatprep.mubr.f32.mxu0 0.0
        %933 = vmatmul.mubr.f32.gmra.mrb[0].mxu0 %v425
        %v934 = vpop.f32.mrb[0].mxu0
        %v935 = vadd.f32 %v337, %v934
        %v936 = vpop.f32.mrb[0].mxu0
        %937 = vmatprep.mubr.f32.mxu0 0.0
        %938 = vmatmul.mubr.f32.gmra.mrb[0].mxu0 %v428
        %v939 = vpop.f32.mrb[0].mxu0
        %v940 = vadd.f32 %v337, %v939
        %v941 = vpop.f32.mrb[0].mxu0
        %942 = vmatprep.mubr.f32.mxu0 0.0
        %943 = vmatmul.mubr.f32.gmra.mrb[0].mxu0 %v431
        %v944 = vpop.f32.mrb[0].mxu0
        %v945 = vadd.f32 %v337, %v944
        %v946 = vpop.f32.mrb[0].mxu0
        %947 = vmatprep.mubr.f32.mxu0 0.0
        %948 = vmatmul.mubr.f32.gmra.mrb[0].mxu0 %v434
        %v949 = vpop.f32.mrb[0].mxu0
        %v950 = vadd.f32 %v337, %v949
        %v951 = vpop.f32.mrb[0].mxu0
        %952 = vmatprep.mubr.f32.mxu0 0.0
        %953 = vmatmul.mubr.f32.gmra.mrb[0].mxu0 %v437
        %v954 = vpop.f32.mrb[0].mxu0
        %v955 = vadd.f32 %v337, %v954
        %v956 = vpop.f32.mrb[0].mxu0
        %957 = vmatprep.mubr.f32.mxu0 0.0
        %958 = vmatmul.mubr.f32.gmra.mrb[0].mxu0 %v440
        %v959 = vpop.f32.mrb[0].mxu0
        %v960 = vadd.f32 %v337, %v959
        %v961 = vpop.f32.mrb[0].mxu0
        %962 = vmatprep.mubr.f32.mxu0 0.0
        %963 = vmatmul.mubr.f32.gmra.mrb[0].mxu0 %v443
        %v964 = vpop.f32.mrb[0].mxu0
        %v965 = vadd.f32 %v337, %v964
        %v966 = vpop.f32.mrb[0].mxu0
        %967 = vmatprep.mubr.f32.mxu0 0.0
        %968 = vmatmul.mubr.f32.gmra.mrb[0].mxu0 %v446
        %v969 = vpop.f32.mrb[0].mxu0
        %v970 = vadd.f32 %v337, %v969
        %v971 = vpop.f32.mrb[0].mxu0
        %972 = vmatprep.mubr.f32.mxu0 0.0
        %973 = vmatmul.mubr.f32.gmra.mrb[0].mxu0 %v449
        %v974 = vpop.f32.mrb[0].mxu0
        %v975 = vadd.f32 %v337, %v974
        %v976 = vpop.f32.mrb[0].mxu0
        %977 = vmatprep.mubr.f32.mxu0 0.0
        %978 = vmatmul.mubr.f32.gmra.mrb[0].mxu0 %v452
        %v979 = vpop.f32.mrb[0].mxu0
        %v980 = vadd.f32 %v337, %v979
        %v981 = vpop.f32.mrb[0].mxu0
        %982 = vmatprep.mubr.f32.mxu0 0.0
        %983 = vmatmul.mubr.f32.gmra.mrb[0].mxu0 %v455
        %v984 = vpop.f32.mrb[0].mxu0
        %v985 = vadd.f32 %v337, %v984
        %v986 = vpop.f32.mrb[0].mxu0
        %987 = vmatprep.mubr.f32.mxu0 0.0
        %988 = vmatmul.mubr.f32.gmra.mrb[0].mxu0 %v458
        %v989 = vpop.f32.mrb[0].mxu0
        %v990 = vadd.f32 %v337, %v989
        %v991 = vpop.f32.mrb[0].mxu0
        %992 = vmatprep.mubr.f32.mxu0 0.0
        %993 = vmatmul.mubr.f32.gmra.mrb[0].mxu0 %v461
        %v994 = vpop.f32.mrb[0].mxu0
        %v995 = vadd.f32 %v337, %v994
        %v996 = vpop.f32.mrb[0].mxu0
        %997 = vmatprep.mubr.f32.mxu0 0.0
        %998 = vmatmul.mubr.f32.gmra.mrb[0].mxu0 %v464
        %v999 = vpop.f32.mrb[0].mxu0
        %v1000 = vadd.f32 %v337, %v999
        %v1001 = vpop.f32.mrb[0].mxu0
        %1002 = vmatprep.mubr.f32.mxu0 0.0
        %1003 = vmatmul.mubr.f32.gmra.mrb[0].mxu0 %v467
        %v1004 = vpop.f32.mrb[0].mxu0
        %v1005 = vadd.f32 %v337, %v1004
        %v1006 = vpop.f32.mrb[0].mxu0
        %1007 = vmatprep.mubr.f32.mxu0 0.0
        %1008 = vmatmul.mubr.f32.gmra.mrb[0].mxu0 %v470
        %v1009 = vpop.f32.mrb[0].mxu0
        %v1010 = vadd.f32 %v337, %v1009
        %v1011 = vpop.f32.mrb[0].mxu0
        %1012 = vmatprep.mubr.f32.mxu0 0.0
        %1013 = vmatmul.mubr.f32.gmra.mrb[0].mxu0 %v473
        %v1014 = vpop.f32.mrb[0].mxu0
        %v1015 = vadd.f32 %v337, %v1014
        %v1016 = vpop.f32.mrb[0].mxu0
        %1017 = vmatprep.mubr.f32.mxu0 0.0
        %1018 = vmatmul.mubr.f32.gmra.mrb[0].mxu0 %v476
        %v1019 = vpop.f32.mrb[0].mxu0
        %v1020 = vadd.f32 %v337, %v1019
        %v1021 = vpop.f32.mrb[0].mxu0
        %1022 = vmatprep.mubr.f32.mxu0 0.0
        %1023 = vmatmul.mubr.f32.gmra.mrb[0].mxu0 %v479
        %v1024 = vpop.f32.mrb[0].mxu0
        %v1025 = vadd.f32 %v337, %v1024
        %v1026 = vpop.f32.mrb[0].mxu0
        %1027 = vmatprep.mubr.f32.mxu0 0.0
        %1028 = vmatmul.mubr.f32.gmra.mrb[0].mxu0 %v482
        %v1029 = vpop.f32.mrb[0].mxu0
        %v1030 = vadd.f32 %v337, %v1029
        %v1031 = vpop.f32.mrb[0].mxu0
        %1032 = vmatprep.mubr.f32.mxu0 0.0
        %1033 = vmatmul.mubr.f32.gmra.mrb[0].mxu0 %v485
        %v1034 = vpop.f32.mrb[0].mxu0
        %v1035 = vadd.f32 %v337, %v1034
        %v1036 = vpop.f32.mrb[0].mxu0
        %1037 = vmatprep.mubr.f32.mxu0 0.0
        %1038 = vmatmul.mubr.f32.gmra.mrb[0].mxu0 %v488
        %v1039 = vpop.f32.mrb[0].mxu0
        %v1040 = vadd.f32 %v337, %v1039
        %v1041 = vpop.f32.mrb[0].mxu0
        %1042 = vmatprep.mubr.f32.mxu0 0.0
        %1043 = vmatmul.mubr.f32.gmra.mrb[0].mxu0 %v491
        %v1044 = vpop.f32.mrb[0].mxu0
        %v1045 = vadd.f32 %v337, %v1044
        %v1046 = vpop.f32.mrb[0].mxu0
        %1047 = vmatprep.mubr.f32.mxu0 0.0
        %1048 = vmatmul.mubr.f32.gmra.mrb[0].mxu0 %v494
        %v1049 = vpop.f32.mrb[0].mxu0
        %v1050 = vadd.f32 %v337, %v1049
        %v1051 = vpop.f32.mrb[0].mxu0
        %1052 = vmatprep.mubr.f32.mxu0 0.0
        %1053 = vmatmul.mubr.f32.gmra.mrb[0].mxu0 %v497
        %v1054 = vpop.f32.mrb[0].mxu0
        %v1055 = vadd.f32 %v337, %v1054
        %v1056 = vpop.f32.mrb[0].mxu0
        %1057 = vmatprep.mubr.f32.mxu0 0.0
        %1058 = vmatmul.mubr.f32.gmra.mrb[0].mxu0 %v500
        %v1059 = vpop.f32.mrb[0].mxu0
        %v1060 = vadd.f32 %v337, %v1059
        %v1061 = vpop.f32.mrb[0].mxu0
        %1062 = vmatprep.mubr.f32.mxu0 0.0
        %1063 = vmatmul.mubr.f32.gmra.mrb[0].mxu0 %v503
        %v1064 = vpop.f32.mrb[0].mxu0
        %v1065 = vadd.f32 %v337, %v1064
        %v1066 = vpop.f32.mrb[0].mxu0
        %1067 = vmatprep.mubr.f32.mxu0 0.0
        %1068 = vmatmul.mubr.f32.gmra.mrb[0].mxu0 %v506
        %v1069 = vpop.f32.mrb[0].mxu0
        %v1070 = vadd.f32 %v337, %v1069
        %v1071 = vpop.f32.mrb[0].mxu0
        %1072 = vmatprep.mubr.f32.mxu0 0.0
        %1073 = vmatmul.mubr.f32.gmra.mrb[0].mxu0 %v509
        %v1074 = vpop.f32.mrb[0].mxu0
        %v1075 = vadd.f32 %v337, %v1074
        %v1076 = vpop.f32.mrb[0].mxu0
        %1077 = vmatprep.mubr.f32.mxu0 0.0
        %1078 = vmatmul.mubr.f32.gmra.mrb[0].mxu0 %v512
        %v1079 = vpop.f32.mrb[0].mxu0
        %v1080 = vadd.f32 %v337, %v1079
        %v1081 = vpop.f32.mrb[0].mxu0
        %1082 = vmatprep.mubr.f32.mxu0 0.0
        %1083 = vmatmul.mubr.f32.gmra.mrb[0].mxu0 %v515
        %v1084 = vpop.f32.mrb[0].mxu0
        %v1085 = vadd.f32 %v337, %v1084
        %v1086 = vpop.f32.mrb[0].mxu0
        %1087 = vmatprep.mubr.f32.mxu0 0.0
        %1088 = vmatmul.mubr.f32.gmra.mrb[0].mxu0 %v518
        %v1089 = vpop.f32.mrb[0].mxu0
        %v1090 = vadd.f32 %v337, %v1089
        %v1091 = vpop.f32.mrb[0].mxu0
        %1092 = vmatprep.mubr.f32.mxu0 0.0
        %1093 = vmatmul.mubr.f32.gmra.mrb[0].mxu0 %v521
        %v1094 = vpop.f32.mrb[0].mxu0
        %v1095 = vadd.f32 %v337, %v1094
        %v1096 = vpop.f32.mrb[0].mxu0
        %1097 = vmatprep.mubr.f32.mxu0 0.0
        %1098 = vmatmul.mubr.f32.gmra.mrb[0].mxu0 %v524
        %v1099 = vpop.f32.mrb[0].mxu0
        %v1100 = vadd.f32 %v337, %v1099
        %v1101 = vpop.f32.mrb[0].mxu0
        %1102 = vmatprep.mubr.f32.mxu0 0.0
        %1103 = vmatmul.mubr.f32.gmra.mrb[0].mxu0 %v527
        %v1104 = vpop.f32.mrb[0].mxu0
        %v1105 = vadd.f32 %v337, %v1104
        %v1106 = vpop.f32.mrb[0].mxu0
        %1107 = vmatprep.mubr.f32.mxu0 0.0
        %1108 = vmatmul.mubr.f32.gmra.mrb[0].mxu0 %v530
        %v1109 = vpop.f32.mrb[0].mxu0
        %v1110 = vadd.f32 %v337, %v1109
        %v1111 = vpop.f32.mrb[0].mxu0
        %1112 = vmatprep.mubr.f32.mxu0 0.0
        %1113 = vmatmul.mubr.f32.gmra.mrb[0].mxu0 %v533
        %v1114 = vpop.f32.mrb[0].mxu0
        %v1115 = vadd.f32 %v337, %v1114
        %v1116 = vpop.f32.mrb[0].mxu0
        %1117 = vmatprep.mubr.f32.mxu0 0.0
        %1118 = vmatmul.mubr.f32.gmra.mrb[0].mxu0 %v536
        %v1119 = vpop.f32.mrb[0].mxu0
        %v1120 = vadd.f32 %v337, %v1119
        %v1121 = vpop.f32.mrb[0].mxu0
        %1122 = vmatprep.mubr.f32.mxu0 0.0
        %1123 = vmatmul.mubr.f32.gmra.mrb[0].mxu0 %v539
        %v1124 = vpop.f32.mrb[0].mxu0
        %v1125 = vadd.f32 %v337, %v1124
        %v1126 = vpop.f32.mrb[0].mxu0
        %1127 = vmatprep.mubr.f32.mxu0 0.0
        %1128 = vmatmul.mubr.f32.gmra.mrb[0].mxu0 %v542
        %v1129 = vpop.f32.mrb[0].mxu0
        %v1130 = vadd.f32 %v337, %v1129
        %v1131 = vpop.f32.mrb[0].mxu0
        %1132 = vmatprep.mubr.f32.mxu0 0.0
        %1133 = vmatmul.mubr.f32.gmra.mrb[0].mxu0 %v545
        %v1134 = vpop.f32.mrb[0].mxu0
        %v1135 = vadd.f32 %v337, %v1134
        %v1136 = vpop.f32.mrb[0].mxu0
        %1137 = vmatprep.mubr.f32.mxu0 0.0
        %1138 = vmatmul.mubr.f32.gmra.mrb[0].mxu0 %v548
        %v1139 = vpop.f32.mrb[0].mxu0
        %v1140 = vadd.f32 %v337, %v1139
        %v1141 = vpop.f32.mrb[0].mxu0
        %1142 = vmatprep.mubr.f32.mxu0 0.0
        %1143 = vmatmul.mubr.f32.gmra.mrb[0].mxu0 %v551
        %v1144 = vpop.f32.mrb[0].mxu0
        %v1145 = vadd.f32 %v337, %v1144
        %v1146 = vpop.f32.mrb[0].mxu0
        %1147 = vmatprep.mubr.f32.mxu0 0.0
        %1148 = vmatmul.mubr.f32.gmra.mrb[0].mxu0 %v554
        %v1149 = vpop.f32.mrb[0].mxu0
        %v1150 = vadd.f32 %v337, %v1149
        %v1151 = vpop.f32.mrb[0].mxu0
        %1152 = vmatprep.mubr.f32.mxu0 0.0
        %1153 = vmatmul.mubr.f32.gmra.mrb[0].mxu0 %v557
        %v1154 = vpop.f32.mrb[0].mxu0
        %v1155 = vadd.f32 %v337, %v1154
        %v1156 = vpop.f32.mrb[0].mxu0
        %1157 = vmatprep.mubr.f32.mxu0 0.0
        %1158 = vmatmul.mubr.f32.gmra.mrb[0].mxu0 %v560
        %v1159 = vpop.f32.mrb[0].mxu0
        %v1160 = vadd.f32 %v337, %v1159
        %v1161 = vpop.f32.mrb[0].mxu0
        %1162 = vmatprep.mubr.f32.mxu0 0.0
        %1163 = vmatmul.mubr.f32.gmra.mrb[0].mxu0 %v563
        %v1164 = vpop.f32.mrb[0].mxu0
        %v1165 = vadd.f32 %v337, %v1164
        %v1166 = vpop.f32.mrb[0].mxu0
        %1167 = vmatprep.mubr.f32.mxu0 0.0
        %1168 = vmatmul.mubr.f32.gmra.mrb[0].mxu0 %v566
        %v1169 = vpop.f32.mrb[0].mxu0
        %v1170 = vadd.f32 %v337, %v1169
        %v1171 = vpop.f32.mrb[0].mxu0
        %1172 = vmatprep.mubr.f32.mxu0 0.0
        %1173 = vmatmul.mubr.f32.gmra.mrb[0].mxu0 %v569
        %v1174 = vpop.f32.mrb[0].mxu0
        %v1175 = vadd.f32 %v337, %v1174
        %v1176 = vpop.f32.mrb[0].mxu0
        %1177 = vmatprep.mubr.f32.mxu0 0.0
        %1178 = vmatmul.mubr.f32.gmra.mrb[0].mxu0 %v572
        %v1179 = vpop.f32.mrb[0].mxu0
        %v1180 = vadd.f32 %v337, %v1179
        %v1181 = vpop.f32.mrb[0].mxu0
        %1182 = vmatprep.mubr.f32.mxu0 0.0
        %1183 = vmatmul.mubr.f32.gmra.mrb[0].mxu0 %v575
        %v1184 = vpop.f32.mrb[0].mxu0
        %v1185 = vadd.f32 %v337, %v1184
        %v1186 = vpop.f32.mrb[0].mxu0
        %1187 = vmatprep.mubr.f32.mxu0 0.0
        %1188 = vmatmul.mubr.f32.gmra.mrb[0].mxu0 %v578
        %v1189 = vpop.f32.mrb[0].mxu0
        %v1190 = vadd.f32 %v337, %v1189
        %v1191 = vpop.f32.mrb[0].mxu0
        %1192 = vmatprep.mubr.f32.mxu0 0.0
        %1193 = vmatmul.mubr.f32.gmra.mrb[0].mxu0 %v581
        %v1194 = vpop.f32.mrb[0].mxu0
        %v1195 = vadd.f32 %v337, %v1194
        %v1196 = vpop.f32.mrb[0].mxu0
        %1197 = vmatprep.mubr.f32.mxu0 0.0
        %1198 = vmatmul.mubr.f32.gmra.mrb[0].mxu0 %v584
        %v1199 = vpop.f32.mrb[0].mxu0
        %v1200 = vadd.f32 %v337, %v1199
        %v1201 = vpop.f32.mrb[0].mxu0
        %1202 = vmatprep.mubr.f32.mxu0 0.0
        %1203 = vmatmul.mubr.f32.gmra.mrb[0].mxu0 %v587
        %v1204 = vpop.f32.mrb[0].mxu0
        %v1205 = vadd.f32 %v337, %v1204
        %v1206 = vpop.f32.mrb[0].mxu0
        %1207 = vmatprep.mubr.f32.mxu0 0.0
        %1208 = vmatmul.mubr.f32.gmra.mrb[0].mxu0 %v590
        %v1209 = vpop.f32.mrb[0].mxu0
        %v1210 = vadd.f32 %v337, %v1209
        %v1211 = vpop.f32.mrb[0].mxu0
        %1212 = vmatprep.mubr.f32.mxu0 0.0
        %1213 = vmatmul.mubr.f32.gmra.mrb[0].mxu0 %v593
        %v1214 = vpop.f32.mrb[0].mxu0
        %v1215 = vadd.f32 %v337, %v1214
        %v1216 = vpop.f32.mrb[0].mxu0
        %1217 = vmatprep.mubr.f32.mxu0 0.0
        %1218 = vmatmul.mubr.f32.gmra.mrb[0].mxu0 %v596
        %v1219 = vpop.f32.mrb[0].mxu0
        %v1220 = vadd.f32 %v337, %v1219
        %v1221 = vpop.f32.mrb[0].mxu0
        %1222 = vmatprep.mubr.f32.mxu0 0.0
        %1223 = vmatmul.mubr.f32.gmra.mrb[0].mxu0 %v599
        %v1224 = vpop.f32.mrb[0].mxu0
        %v1225 = vadd.f32 %v337, %v1224
        %v1226 = vpop.f32.mrb[0].mxu0
        %1227 = vmatprep.mubr.f32.mxu0 0.0
        %1228 = vmatmul.mubr.f32.gmra.mrb[0].mxu0 %v602
        %v1229 = vpop.f32.mrb[0].mxu0
        %v1230 = vadd.f32 %v337, %v1229
        %v1231 = vpop.f32.mrb[0].mxu0
        %1232 = vmatprep.mubr.f32.mxu0 0.0
        %1233 = vmatmul.mubr.f32.gmra.mrb[0].mxu0 %v605
        %v1234 = vpop.f32.mrb[0].mxu0
        %v1235 = vadd.f32 %v337, %v1234
        %v1236 = vpop.f32.mrb[0].mxu0
        %1237 = vmatprep.mubr.f32.mxu0 0.0
        %1238 = vmatmul.mubr.f32.gmra.mrb[0].mxu0 %v608
        %v1239 = vpop.f32.mrb[0].mxu0
        %v1240 = vadd.f32 %v337, %v1239
        %v1241 = vpop.f32.mrb[0].mxu0
        %1242 = vmatprep.mubr.f32.mxu0 0.0
        %1243 = vmatmul.mubr.f32.gmra.mrb[0].mxu0 %v611
        %v1244 = vpop.f32.mrb[0].mxu0
        %v1245 = vadd.f32 %v337, %v1244
        %v1246 = vpop.f32.mrb[0].mxu0
        %1247 = vmatprep.mubr.f32.mxu0 0.0
        %1248 = vmatmul.mubr.f32.gmra.mrb[0].mxu0 %v614
        %v1249 = vpop.f32.mrb[0].mxu0
        %v1250 = vadd.f32 %v337, %v1249
        %v1251 = vpop.f32.mrb[0].mxu0
        %1252 = vmatprep.mubr.f32.mxu0 0.0
        %1253 = vmatmul.mubr.f32.gmra.mrb[0].mxu0 %v617
        %v1254 = vpop.f32.mrb[0].mxu0
        %v1255 = vadd.f32 %v337, %v1254
        %v1256 = vpop.f32.mrb[0].mxu0
        %1257 = vmatprep.mubr.f32.mxu0 0.0
        %1258 = vmatmul.mubr.f32.gmra.mrb[0].mxu0 %v620
        %v1259 = vpop.f32.mrb[0].mxu0
        %v1260 = vadd.f32 %v337, %v1259
        %v1261 = vpop.f32.mrb[0].mxu0
        %1262 = vmatprep.mubr.f32.mxu0 0.0
        %1263 = vmatmul.mubr.f32.gmra.mrb[0].mxu0 %v623
        %v1264 = vpop.f32.mrb[0].mxu0
        %v1265 = vadd.f32 %v337, %v1264
        %v1266 = vpop.f32.mrb[0].mxu0
        %1267 = vmatprep.mubr.f32.mxu0 0.0
        %1268 = vmatmul.mubr.f32.gmra.mrb[0].mxu0 %v626
        %v1269 = vpop.f32.mrb[0].mxu0
        %v1270 = vadd.f32 %v337, %v1269
        %v1271 = vpop.f32.mrb[0].mxu0
        %1272 = vmatprep.mubr.f32.mxu0 0.0
        %1273 = vmatmul.mubr.f32.gmra.mrb[0].mxu0 %v629
        %v1274 = vpop.f32.mrb[0].mxu0
        %v1275 = vadd.f32 %v337, %v1274
        %v1276 = vpop.f32.mrb[0].mxu0
        %1277 = vmatprep.mubr.f32.mxu0 0.0
        %1278 = vmatmul.mubr.f32.gmra.mrb[0].mxu0 %v632
        %v1279 = vpop.f32.mrb[0].mxu0
        %v1280 = vadd.f32 %v337, %v1279
        %v1281 = vpop.f32.mrb[0].mxu0
        %1282 = vmatprep.mubr.f32.mxu0 0.0
        %1283 = vmatmul.mubr.f32.gmra.mrb[0].mxu0 %v635
        %v1284 = vpop.f32.mrb[0].mxu0
        %v1285 = vadd.f32 %v337, %v1284
        %v1286 = vpop.f32.mrb[0].mxu0
        %1287 = vmatprep.mubr.f32.mxu0 0.0
        %1288 = vmatmul.mubr.f32.gmra.mrb[0].mxu0 %v638
        %v1289 = vpop.f32.mrb[0].mxu0
        %v1290 = vadd.f32 %v337, %v1289
        %v1291 = vpop.f32.mrb[0].mxu0
        %1292 = vmatprep.mubr.f32.mxu0 0.0
        %1293 = vmatmul.mubr.f32.gmra.mrb[0].mxu0 %v641
        %v1294 = vpop.f32.mrb[0].mxu0
        %v1295 = vadd.f32 %v337, %v1294
        %v1296 = vpop.f32.mrb[0].mxu0
        %1297 = vmatprep.mubr.f32.mxu0 0.0
        %1298 = vmatmul.mubr.f32.gmra.mrb[0].mxu0 %v644
        %v1299 = vpop.f32.mrb[0].mxu0
        %v1300 = vadd.f32 %v337, %v1299
        %v1301 = vpop.f32.mrb[0].mxu0
        %1302 = vmatprep.mubr.f32.mxu0 0.0
        %1303 = vmatmul.mubr.f32.gmra.mrb[0].mxu0 %v647
        %v1304 = vpop.f32.mrb[0].mxu0
        %v1305 = vadd.f32 %v337, %v1304
        %v1306 = vpop.f32.mrb[0].mxu0
        %1307 = vmatprep.mubr.f32.mxu0 0.0
        %1308 = vmatmul.mubr.f32.gmra.mrb[0].mxu0 %v650
        %v1309 = vpop.f32.mrb[0].mxu0
        %v1310 = vadd.f32 %v337, %v1309
        %v1311 = vpop.f32.mrb[0].mxu0
        %1312 = vmatprep.mubr.f32.mxu0 0.0
        %1313 = vmatmul.mubr.f32.gmra.mrb[0].mxu0 %v653
        %v1314 = vpop.f32.mrb[0].mxu0
        %v1315 = vadd.f32 %v337, %v1314
        %v1316 = vpop.f32.mrb[0].mxu0
        %1317 = vmatprep.mubr.f32.mxu0 0.0
        %1318 = vmatmul.mubr.f32.gmra.mrb[0].mxu0 %v656
        %v1319 = vpop.f32.mrb[0].mxu0
        %v1320 = vadd.f32 %v337, %v1319
        %v1321 = vpop.f32.mrb[0].mxu0
        %1322 = vmatprep.mubr.f32.mxu0 0.0
        %1323 = vmatmul.mubr.f32.gmra.mrb[0].mxu0 %v659
        %v1324 = vpop.f32.mrb[0].mxu0
        %v1325 = vadd.f32 %v337, %v1324
        %v1326 = vpop.f32.mrb[0].mxu0
        %1327 = vmatprep.mubr.f32.mxu0 0.0
        %1328 = vmatmul.mubr.f32.gmra.mrb[0].mxu0 %v662
        %v1329 = vpop.f32.mrb[0].mxu0
        %v1330 = vadd.f32 %v337, %v1329
        %v1331 = vpop.f32.mrb[0].mxu0
        %1332 = vmatprep.mubr.f32.mxu0 0.0
        %1333 = vmatmul.mubr.f32.gmra.mrb[0].mxu0 %v665
        %v1334 = vpop.f32.mrb[0].mxu0
        %v1335 = vadd.f32 %v337, %v1334
        %v1336 = vpop.f32.mrb[0].mxu0
        %1337 = vmatprep.mubr.f32.mxu0 0.0
        %1338 = vmatmul.mubr.f32.gmra.mrb[0].mxu0 %v668
        %v1339 = vpop.f32.mrb[0].mxu0
        %v1340 = vadd.f32 %v337, %v1339
        %v1341 = vpop.f32.mrb[0].mxu0
        %1342 = vmatprep.mubr.f32.mxu0 0.0
        %1343 = vmatmul.mubr.f32.gmra.mrb[0].mxu0 %v671
        %v1344 = vpop.f32.mrb[0].mxu0
        %v1345 = vadd.f32 %v337, %v1344
        %v1346 = vpop.f32.mrb[0].mxu0
        %1347 = vmatprep.mubr.f32.mxu0 0.0
        %1348 = vmatmul.mubr.f32.gmra.mrb[0].mxu0 %v674
        %v1349 = vpop.f32.mrb[0].mxu0
        %v1350 = vadd.f32 %v337, %v1349
        %v1351 = vpop.f32.mrb[0].mxu0
        %1352 = vmatprep.mubr.f32.mxu0 0.0
        %1353 = vmatmul.mubr.f32.gmra.mrb[0].mxu0 %v677
        %v1354 = vpop.f32.mrb[0].mxu0
        %v1355 = vadd.f32 %v337, %v1354
        %v1356 = vpop.f32.mrb[0].mxu0
        %1357 = vmatprep.mubr.f32.mxu0 0.0
        %1358 = vmatmul.mubr.f32.gmra.mrb[0].mxu0 %v680
        %v1359 = vpop.f32.mrb[0].mxu0
        %v1360 = vadd.f32 %v337, %v1359
        %v1361 = vpop.f32.mrb[0].mxu0
        %1362 = vmatprep.mubr.f32.mxu0 0.0
        %1363 = vmatmul.mubr.f32.gmra.mrb[0].mxu0 %v683
        %v1364 = vpop.f32.mrb[0].mxu0
        %v1365 = vadd.f32 %v337, %v1364
        %v1366 = vpop.f32.mrb[0].mxu0
        %1367 = vmatprep.mubr.f32.mxu0 0.0
        %1368 = vmatmul.mubr.f32.gmra.mrb[0].mxu0 %v686
        %v1369 = vpop.f32.mrb[0].mxu0
        %v1370 = vadd.f32 %v337, %v1369
        %v1371 = vpop.f32.mrb[0].mxu0
        %1372 = vmatprep.mubr.f32.mxu0 0.0
        %1373 = vmatmul.mubr.f32.gmra.mrb[0].mxu0 %v689
        %v1374 = vpop.f32.mrb[0].mxu0
        %v1375 = vadd.f32 %v337, %v1374
        %v1376 = vpop.f32.mrb[0].mxu0
        %1377 = vmatprep.mubr.f32.mxu0 0.0
        %1378 = vmatmul.mubr.f32.gmra.mrb[0].mxu0 %v692
        %v1379 = vpop.f32.mrb[0].mxu0
        %v1380 = vadd.f32 %v337, %v1379
        %v1381 = vpop.f32.mrb[0].mxu0
        %1382 = vmatprep.mubr.f32.mxu0 0.0
        %1383 = vmatmul.mubr.f32.gmra.mrb[0].mxu0 %v695
        %v1384 = vpop.f32.mrb[0].mxu0
        %v1385 = vadd.f32 %v337, %v1384
        %v1386 = vpop.f32.mrb[0].mxu0
        %1387 = vmatprep.mubr.f32.mxu0 0.0
        %1388 = vmatmul.mubr.f32.gmra.mrb[0].mxu0 %v698
        %v1389 = vpop.f32.mrb[0].mxu0
        %v1390 = vadd.f32 %v337, %v1389
        %v1391 = vpop.f32.mrb[0].mxu0
        %1392 = vmatprep.mubr.f32.mxu0 0.0
        %1393 = vmatmul.mubr.f32.gmra.mrb[0].mxu0 %v701
        %v1394 = vpop.f32.mrb[0].mxu0
        %v1395 = vadd.f32 %v337, %v1394
        %v1396 = vpop.f32.mrb[0].mxu0
        %1397 = vmatprep.mubr.f32.mxu0 0.0
        %1398 = vmatmul.mubr.f32.gmra.mrb[0].mxu0 %v704
        %v1399 = vpop.f32.mrb[0].mxu0
        %v1400 = vadd.f32 %v337, %v1399
        %v1401 = vpop.f32.mrb[0].mxu0
        %1402 = vmatprep.mubr.f32.mxu0 0.0
        %1403 = vmatmul.mubr.f32.gmra.mrb[0].mxu0 %v707
        %v1404 = vpop.f32.mrb[0].mxu0
        %v1405 = vadd.f32 %v337, %v1404
        %v1406 = vpop.f32.mrb[0].mxu0
        %1407 = vmatprep.mubr.f32.mxu0 0.0
        %1408 = vmatmul.mubr.f32.gmra.mrb[0].mxu0 %v710
        %v1409 = vpop.f32.mrb[0].mxu0
        %v1410 = vadd.f32 %v337, %v1409
        %v1411 = vpop.f32.mrb[0].mxu0
        %1412 = vmatprep.mubr.f32.mxu0 0.0
        %1413 = vmatmul.mubr.f32.gmra.mrb[0].mxu0 %v713
        %v1414 = vpop.f32.mrb[0].mxu0
        %v1415 = vadd.f32 %v337, %v1414
        %v1416 = vpop.f32.mrb[0].mxu0
        %1417 = vmatprep.mubr.f32.mxu0 0.0
        %1418 = vmatmul.mubr.f32.gmra.mrb[0].mxu0 %v716
        %v1419 = vpop.f32.mrb[0].mxu0
        %v1420 = vadd.f32 %v337, %v1419
        %v1421 = vpop.f32.mrb[0].mxu0
        %1422 = vmatprep.mubr.f32.mxu0 0.0
        %1423 = vmatmul.mubr.f32.gmra.mrb[0].mxu0 %v719
        %v1424 = vpop.f32.mrb[0].mxu0
        %v1425 = vadd.f32 %v337, %v1424
        %v1426 = vpop.f32.mrb[0].mxu0
        %1427 = vmatprep.mubr.f32.mxu0 0.0
        %1428 = vmatmul.mubr.f32.gmra.mrb[0].mxu0 %v722
        %v1429 = vpop.f32.mrb[0].mxu0
        %v1430 = vadd.f32 %v337, %v1429
        %v1431 = vpop.f32.mrb[0].mxu0
        %1432 = vdwg.mxu0
        %v1433 = vmax.f32 %v795, 0.0
        %v1434 = vmax.f32 %v800, 0.0
        %v1435 = vmax.f32 %v805, 0.0
        %v1436 = vmax.f32 %v810, 0.0
        %v1437 = vmax.f32 %v815, 0.0
        %v1438 = vmax.f32 %v820, 0.0
        %v1439 = vmax.f32 %v825, 0.0
        %v1440 = vmax.f32 %v830, 0.0
        %v1441 = vmax.f32 %v835, 0.0
        %v1442 = vmax.f32 %v840, 0.0
        %v1443 = vmax.f32 %v845, 0.0
        %v1444 = vmax.f32 %v850, 0.0
        %v1445 = vmax.f32 %v855, 0.0
        %v1446 = vmax.f32 %v860, 0.0
        %v1447 = vmax.f32 %v865, 0.0
        %v1448 = vmax.f32 %v870, 0.0
        %v1449 = vmax.f32 %v875, 0.0
        %v1450 = vmax.f32 %v880, 0.0
        %v1451 = vmax.f32 %v885, 0.0
        %v1452 = vmax.f32 %v890, 0.0
        %v1453 = vmax.f32 %v895, 0.0
        %v1454 = vmax.f32 %v900, 0.0
        %v1455 = vmax.f32 %v905, 0.0
        %v1456 = vmax.f32 %v910, 0.0
        %v1457 = vmax.f32 %v915, 0.0
        %v1458 = vmax.f32 %v920, 0.0
        %v1459 = vmax.f32 %v925, 0.0
        %v1460 = vmax.f32 %v930, 0.0
        %v1461 = vmax.f32 %v935, 0.0
        %v1462 = vmax.f32 %v940, 0.0
        %v1463 = vmax.f32 %v945, 0.0
        %v1464 = vmax.f32 %v950, 0.0
        %v1465 = vmax.f32 %v955, 0.0
        %v1466 = vmax.f32 %v960, 0.0
        %v1467 = vmax.f32 %v965, 0.0
        %v1468 = vmax.f32 %v970, 0.0
        %v1469 = vmax.f32 %v975, 0.0
        %v1470 = vmax.f32 %v980, 0.0
        %v1471 = vmax.f32 %v985, 0.0
        %v1472 = vmax.f32 %v990, 0.0
        %v1473 = vmax.f32 %v995, 0.0
        %v1474 = vmax.f32 %v1000, 0.0
        %v1475 = vmax.f32 %v1005, 0.0
        %v1476 = vmax.f32 %v1010, 0.0
        %v1477 = vmax.f32 %v1015, 0.0
        %v1478 = vmax.f32 %v1020, 0.0
        %v1479 = vmax.f32 %v1025, 0.0
        %v1480 = vmax.f32 %v1030, 0.0
        %v1481 = vmax.f32 %v1035, 0.0
        %v1482 = vmax.f32 %v1040, 0.0
        %v1483 = vmax.f32 %v1045, 0.0
        %v1484 = vmax.f32 %v1050, 0.0
        %v1485 = vmax.f32 %v1055, 0.0
        %v1486 = vmax.f32 %v1060, 0.0
        %v1487 = vmax.f32 %v1065, 0.0
        %v1488 = vmax.f32 %v1070, 0.0
        %v1489 = vmax.f32 %v1075, 0.0
        %v1490 = vmax.f32 %v1080, 0.0
        %v1491 = vmax.f32 %v1085, 0.0
        %v1492 = vmax.f32 %v1090, 0.0
        %v1493 = vmax.f32 %v1095, 0.0
        %v1494 = vmax.f32 %v1100, 0.0
        %v1495 = vmax.f32 %v1105, 0.0
        %v1496 = vmax.f32 %v1110, 0.0
        %v1497 = vmax.f32 %v1115, 0.0
        %v1498 = vmax.f32 %v1120, 0.0
        %v1499 = vmax.f32 %v1125, 0.0
        %v1500 = vmax.f32 %v1130, 0.0
        %v1501 = vmax.f32 %v1135, 0.0
        %v1502 = vmax.f32 %v1140, 0.0
        %v1503 = vmax.f32 %v1145, 0.0
        %v1504 = vmax.f32 %v1150, 0.0
        %v1505 = vmax.f32 %v1155, 0.0
        %v1506 = vmax.f32 %v1160, 0.0
        %v1507 = vmax.f32 %v1165, 0.0
        %v1508 = vmax.f32 %v1170, 0.0
        %v1509 = vmax.f32 %v1175, 0.0
        %v1510 = vmax.f32 %v1180, 0.0
        %v1511 = vmax.f32 %v1185, 0.0
        %v1512 = vmax.f32 %v1190, 0.0
        %v1513 = vmax.f32 %v1195, 0.0
        %v1514 = vmax.f32 %v1200, 0.0
        %v1515 = vmax.f32 %v1205, 0.0
        %v1516 = vmax.f32 %v1210, 0.0
        %v1517 = vmax.f32 %v1215, 0.0
        %v1518 = vmax.f32 %v1220, 0.0
        %v1519 = vmax.f32 %v1225, 0.0
        %v1520 = vmax.f32 %v1230, 0.0
        %v1521 = vmax.f32 %v1235, 0.0
        %v1522 = vmax.f32 %v1240, 0.0
        %v1523 = vmax.f32 %v1245, 0.0
        %v1524 = vmax.f32 %v1250, 0.0
        %v1525 = vmax.f32 %v1255, 0.0
        %v1526 = vmax.f32 %v1260, 0.0
        %v1527 = vmax.f32 %v1265, 0.0
        %v1528 = vmax.f32 %v1270, 0.0
        %v1529 = vmax.f32 %v1275, 0.0
        %v1530 = vmax.f32 %v1280, 0.0
        %v1531 = vmax.f32 %v1285, 0.0
        %v1532 = vmax.f32 %v1290, 0.0
        %v1533 = vmax.f32 %v1295, 0.0
        %v1534 = vmax.f32 %v1300, 0.0
        %v1535 = vmax.f32 %v1305, 0.0
        %v1536 = vmax.f32 %v1310, 0.0
        %v1537 = vmax.f32 %v1315, 0.0
        %v1538 = vmax.f32 %v1320, 0.0
        %v1539 = vmax.f32 %v1325, 0.0
        %v1540 = vmax.f32 %v1330, 0.0
        %v1541 = vmax.f32 %v1335, 0.0
        %v1542 = vmax.f32 %v1340, 0.0
        %v1543 = vmax.f32 %v1345, 0.0
        %v1544 = vmax.f32 %v1350, 0.0
        %v1545 = vmax.f32 %v1355, 0.0
        %v1546 = vmax.f32 %v1360, 0.0
        %v1547 = vmax.f32 %v1365, 0.0
        %v1548 = vmax.f32 %v1370, 0.0
        %v1549 = vmax.f32 %v1375, 0.0
        %v1550 = vmax.f32 %v1380, 0.0
        %v1551 = vmax.f32 %v1385, 0.0
        %v1552 = vmax.f32 %v1390, 0.0
        %v1553 = vmax.f32 %v1395, 0.0
        %v1554 = vmax.f32 %v1400, 0.0
        %v1555 = vmax.f32 %v1405, 0.0
        %v1556 = vmax.f32 %v1410, 0.0
        %v1557 = vmax.f32 %v1415, 0.0
        %v1558 = vmax.f32 %v1420, 0.0
        %v1559 = vmax.f32 %v1425, 0.0
        %v1560 = vmax.f32 %v1430, 0.0
        %v1561 = vmax.f32 %v1433, %v1435
        %v1562 = vmax.f32 %v1434, %v1436
        %v1563 = vmax.f32 %v1437, %v1439
        %v1564 = vmax.f32 %v1438, %v1440
        %v1565 = vmax.f32 %v1441, %v1443
        %v1566 = vmax.f32 %v1442, %v1444
        %v1567 = vmax.f32 %v1445, %v1447
        %v1568 = vmax.f32 %v1446, %v1448
        %v1569 = vmax.f32 %v1449, %v1451
        %v1570 = vmax.f32 %v1450, %v1452
        %v1571 = vmax.f32 %v1453, %v1455
        %v1572 = vmax.f32 %v1454, %v1456
        %v1573 = vmax.f32 %v1457, %v1459
        %v1574 = vmax.f32 %v1458, %v1460
        %v1575 = vmax.f32 %v1461, %v1463
        %v1576 = vmax.f32 %v1462, %v1464
        %v1577 = vmax.f32 %v1465, %v1467
        %v1578 = vmax.f32 %v1466, %v1468
        %v1579 = vmax.f32 %v1469, %v1471
        %v1580 = vmax.f32 %v1470, %v1472
        %v1581 = vmax.f32 %v1473, %v1475
        %v1582 = vmax.f32 %v1474, %v1476
        %v1583 = vmax.f32 %v1477, %v1479
        %v1584 = vmax.f32 %v1478, %v1480
        %v1585 = vmax.f32 %v1481, %v1483
        %v1586 = vmax.f32 %v1482, %v1484
        %v1587 = vmax.f32 %v1485, %v1487
        %v1588 = vmax.f32 %v1486, %v1488
        %v1589 = vmax.f32 %v1489, %v1491
        %v1590 = vmax.f32 %v1490, %v1492
        %v1591 = vmax.f32 %v1493, %v1495
        %v1592 = vmax.f32 %v1494, %v1496
        %v1593 = vmax.f32 %v1497, %v1499
        %v1594 = vmax.f32 %v1498, %v1500
        %v1595 = vmax.f32 %v1501, %v1503
        %v1596 = vmax.f32 %v1502, %v1504
        %v1597 = vmax.f32 %v1505, %v1507
        %v1598 = vmax.f32 %v1506, %v1508
        %v1599 = vmax.f32 %v1509, %v1511
        %v1600 = vmax.f32 %v1510, %v1512
        %v1601 = vmax.f32 %v1513, %v1515
        %v1602 = vmax.f32 %v1514, %v1516
        %v1603 = vmax.f32 %v1517, %v1519
        %v1604 = vmax.f32 %v1518, %v1520
        %v1605 = vmax.f32 %v1521, %v1523
        %v1606 = vmax.f32 %v1522, %v1524
        %v1607 = vmax.f32 %v1525, %v1527
        %v1608 = vmax.f32 %v1526, %v1528
        %v1609 = vmax.f32 %v1529, %v1531
        %v1610 = vmax.f32 %v1530, %v1532
        %v1611 = vmax.f32 %v1533, %v1535
        %v1612 = vmax.f32 %v1534, %v1536
        %v1613 = vmax.f32 %v1537, %v1539
        %v1614 = vmax.f32 %v1538, %v1540
        %v1615 = vmax.f32 %v1541, %v1543
        %v1616 = vmax.f32 %v1542, %v1544
        %v1617 = vmax.f32 %v1545, %v1547
        %v1618 = vmax.f32 %v1546, %v1548
        %v1619 = vmax.f32 %v1549, %v1551
        %v1620 = vmax.f32 %v1550, %v1552
        %v1621 = vmax.f32 %v1553, %v1555
        %v1622 = vmax.f32 %v1554, %v1556
        %v1623 = vmax.f32 %v1557, %v1559
        %v1624 = vmax.f32 %v1558, %v1560
        %v1625 = vmax.f32 %v1561, %v1563
        %v1626 = vmax.f32 %v1562, %v1564
        %v1627 = vmax.f32 %v1565, %v1567
        %v1628 = vmax.f32 %v1566, %v1568
        %v1629 = vmax.f32 %v1569, %v1571
        %v1630 = vmax.f32 %v1570, %v1572
        %v1631 = vmax.f32 %v1573, %v1575
        %v1632 = vmax.f32 %v1574, %v1576
        %v1633 = vmax.f32 %v1577, %v1579
        %v1634 = vmax.f32 %v1578, %v1580
        %v1635 = vmax.f32 %v1581, %v1583
        %v1636 = vmax.f32 %v1582, %v1584
        %v1637 = vmax.f32 %v1585, %v1587
        %v1638 = vmax.f32 %v1586, %v1588
        %v1639 = vmax.f32 %v1589, %v1591
        %v1640 = vmax.f32 %v1590, %v1592
        %v1641 = vmax.f32 %v1593, %v1595
        %v1642 = vmax.f32 %v1594, %v1596
        %v1643 = vmax.f32 %v1597, %v1599
        %v1644 = vmax.f32 %v1598, %v1600
        %v1645 = vmax.f32 %v1601, %v1603
        %v1646 = vmax.f32 %v1602, %v1604
        %v1647 = vmax.f32 %v1605, %v1607
        %v1648 = vmax.f32 %v1606, %v1608
        %v1649 = vmax.f32 %v1609, %v1611
        %v1650 = vmax.f32 %v1610, %v1612
        %v1651 = vmax.f32 %v1613, %v1615
        %v1652 = vmax.f32 %v1614, %v1616
        %v1653 = vmax.f32 %v1617, %v1619
        %v1654 = vmax.f32 %v1618, %v1620
        %v1655 = vmax.f32 %v1621, %v1623
        %v1656 = vmax.f32 %v1622, %v1624
        %vm1657 = vcmask 261120
        %1658 = vst.msk [vmem:[%s188] sm:$0xff] %vm1657, %v1625
        %1659 = vst.msk [vmem:[%s188 + $0x8] sm:$0xff] %vm1657, %v1626
        %1660 = vst.msk [vmem:[%s188 + $0x10] sm:$0xff] %vm1657, %v1627
        %1661 = vst.msk [vmem:[%s188 + $0x18] sm:$0xff] %vm1657, %v1628
        %1662 = vst.msk [vmem:[%s188 + $0x20] sm:$0xff] %vm1657, %v1629
        %1663 = vst.msk [vmem:[%s188 + $0x28] sm:$0xff] %vm1657, %v1630
        %1664 = vst.msk [vmem:[%s188 + $0x30] sm:$0xff] %vm1657, %v1631
        %1665 = vst.msk [vmem:[%s188 + $0x38] sm:$0xff] %vm1657, %v1632
        %1666 = vst.msk [vmem:[%s188 + $0x40] sm:$0xff] %vm1657, %v1633
        %1667 = vst.msk [vmem:[%s188 + $0x48] sm:$0xff] %vm1657, %v1634
        %1668 = vst.msk [vmem:[%s188 + $0x50] sm:$0xff] %vm1657, %v1635
        %1669 = vst.msk [vmem:[%s188 + $0x58] sm:$0xff] %vm1657, %v1636
        %1670 = vst.msk [vmem:[%s188 + $0x60] sm:$0xff] %vm1657, %v1637
        %1671 = vst.msk [vmem:[%s188 + $0x68] sm:$0xff] %vm1657, %v1638
        %1672 = vst.msk [vmem:[%s188 + $0x70] sm:$0xff] %vm1657, %v1639
        %1673 = vst.msk [vmem:[%s188 + $0x78] sm:$0xff] %vm1657, %v1640
        %1674 = vst.msk [vmem:[%s188 + $0x80] sm:$0xff] %vm1657, %v1641
        %1675 = vst.msk [vmem:[%s188 + $0x88] sm:$0xff] %vm1657, %v1642
        %1676 = vst.msk [vmem:[%s188 + $0x90] sm:$0xff] %vm1657, %v1643
        %1677 = vst.msk [vmem:[%s188 + $0x98] sm:$0xff] %vm1657, %v1644
        %1678 = vst.msk [vmem:[%s188 + $0xa0] sm:$0xff] %vm1657, %v1645
        %1679 = vst.msk [vmem:[%s188 + $0xa8] sm:$0xff] %vm1657, %v1646
        %1680 = vst.msk [vmem:[%s188 + $0xb0] sm:$0xff] %vm1657, %v1647
        %1681 = vst.msk [vmem:[%s188 + $0xb8] sm:$0xff] %vm1657, %v1648
        %1682 = vst.msk [vmem:[%s188 + $0xc0] sm:$0xff] %vm1657, %v1649
        %1683 = vst.msk [vmem:[%s188 + $0xc8] sm:$0xff] %vm1657, %v1650
        %1684 = vst.msk [vmem:[%s188 + $0xd0] sm:$0xff] %vm1657, %v1651
        %1685 = vst.msk [vmem:[%s188 + $0xd8] sm:$0xff] %vm1657, %v1652
        %1686 = vst.msk [vmem:[%s188 + $0xe0] sm:$0xff] %vm1657, %v1653
        %1687 = vst.msk [vmem:[%s188 + $0xe8] sm:$0xff] %vm1657, %v1654
        %1688 = vst.msk [vmem:[%s188 + $0xf0] sm:$0xff] %vm1657, %v1655
        %1689 = vst.msk [vmem:[%s188 + $0xf8] sm:$0xff] %vm1657, %v1656
        %s1690 = sand.u32 %s109, 1
        %s1691 = scalar_lea.sflag [#allocation3], %s1690
        %s1692 = sand.u32 %s109, 1
        %s1693 = smul.addr %s1692, 256
        %s1694 = scalar_lea.vmem [#allocation2], %s1693
        // Predicated region
        $region33: #{tpu_custom_call.1} parent=31 // pred_check
          %p1695 = pneg %p119
        $region34: #{tpu_custom_call.1} parent=31 // pred_check_branch
          %1697 = sbr.rel (%p1695) target = $region36
        $region35: #{tpu_custom_call.1} parent=31 // pred_region
          %s1698 = smul.u32 16, %s22
          %s1700 = ssub.s32 4096, 4096
          %1701 = vsyncadd %s1691, %s1700
          %s1702 = smul.addr %s1698, 2
          %s1703 = smul.addr %s21, 32
          %s1704 = sadd.s32 %s1702, %s1703
          %s1705 = smul.addr %s1704, 128
          %s1706 = scalar_lea.hbm %s3, %s1705
          %s1707 = sshll.u32 %s1694, 4
          %s1708 = int_to_ptr.vmem [resolvable:$true] %s1707
          %1713 = dma.vmem_to_hbm [thread:$0]  %s1708, 4096, %s1706, %s1691, 128, 128, 8
        $region36: #{tpu_custom_call.1} parent=31 // pred_fallthru
          _
      $region32: #{tpu_custom_call.1} parent=5 // pred_fallthru
        _
      %p1714 = scmp.le.s32.totalorder 2, %s12
      // Predicated region
      $region37: #{tpu_custom_call.1} parent=5 // pred_check
        %p1715 = pneg %p1714
      $region38: #{tpu_custom_call.1} parent=5 // pred_check_branch
        %1717 = sbr.rel (%p1715) target = $region40
      $region39: #{tpu_custom_call.1} parent=5 // pred_region
        %s1718 = ssub.s32 %s12, 2
        // Predicated region
        $region41: #{tpu_custom_call.1} parent=39 // pred_check
          %p1719 = pneg %p125
        $region42: #{tpu_custom_call.1} parent=39 // pred_check_branch
          %1721 = sbr.rel (%p1719) target = $region44
        $region43: #{tpu_custom_call.1} parent=39 // pred_region
          %s1722 = sand.u32 %s110, 1
          %s1723 = scalar_lea.sflag [#allocation3], %s1722
          %s1724 = sand.u32 %s110, 1
          %s1725 = smul.addr %s1724, 256
          %s1726 = scalar_lea.vmem [#allocation2], %s1725
          %1727 = dma.done %s1723, 4096
        $region44: #{tpu_custom_call.1} parent=39 // pred_fallthru
          _
      $region40: #{tpu_custom_call.1} parent=5 // pred_fallthru
        _
    $region6: #{tpu_custom_call.1} parent=1 // loop_footer
      %s16 = sadd.s32 1, %s12
    $region7: #{tpu_custom_call.1} parent=1 // loop_footer_branch
      %11 = sbr.rel target = $region3
    $region8: #{tpu_custom_call.1} parent=1 // loop_exit
      _
    %1728 = vsyncpa [#allocation3], 1
    %s1729 = scalar_lea.sflag [#allocation3], 1
    %1730 = vsyncpa %s1729, 1

</llo_original>
